<compile_context>
chip_gen: v7x
topology: tpu7x:2x2x1
jax: 0.10.0
libtpu: 0.0.40
codegen_flags: <defaults>
</compile_context>

<pallas_src>
import functools

import jax
import jax.numpy as jnp
from jax import lax
from jax.experimental import pallas as pl
from jax.experimental.pallas import tpu as pltpu

# ----------------------------- model dims (small, synthetic) -----------------
VOCAB = 64      # vocab_size
EMB   = 32      # embedding_dim
HID   = 32      # hidden_dim
BATCH = 2
SEQ   = 8
VPAD  = 128     # lane-dense padded head width


# ----------------------------- Pallas kernel ---------------------------------
def lstm_kernel(x_ref,                          # [T*B, E]   time-major embeddings
                w_in_ref, b_in_ref,             # [E, 8H]  [1, 8H]  (pre-scaled)
                w_rec_ref,                      # [2H, 8H] fused recurrent weights
                fixmul_ref, fixadd_ref,         # [1, 8H]  tanh->sigmoid fixups
                l1mask_ref,                     # [1, 2H]  1 on layer-1 lanes
                wout_ref, bout_ref,             # [2H, VPAD] [1, VPAD]
                logits_ref,                     # [T*B, VPAD] output
                h_buf_ref,                      # [T*B, 2H] VMEM scratch
                *, T, B, H):
    w_rec   = w_rec_ref[...]                    # resident recurrent weights
    fix_mul = fixmul_ref[...]
    fix_add = fixadd_ref[...]

    # ---- hoisted input projection: one MXU op gives every step's additive
    #      term (layer-1 pre-activations on its lanes, layer-2 bias on its
    #      lanes), gate columns already interleaved & pre-scaled -------------
    addend = (jnp.dot(x_ref[...], w_in_ref[...],
                      preferred_element_type=jnp.float32)
              + b_in_ref[...])                              # [T*B, 8H]
    addend_rows = [addend[t * B:(t + 1) * B, :] for t in range(T)]
    bias_last = jnp.broadcast_to(b_in_ref[...], (B, 8 * H))  # final skew step

    def cell(gates, c_prev):
        # Single tanh over both layers' 8 gate blocks; sigmoid lanes were
        # pre-scaled by 0.5 so sigmoid(x) = 0.5*tanh(x/2) + 0.5.
        a = jnp.tanh(gates) * fix_mul + fix_add
        i_p = a[:, 0 * H:2 * H]          # [i1 | i2]
        f_p = a[:, 2 * H:4 * H]          # [f1 | f2]
        g_p = a[:, 4 * H:6 * H]          # [g1 | g2]
        o_p = a[:, 6 * H:8 * H]          # [o1 | o2]
        c_new = f_p * c_prev + i_p * g_p          # packed [c1(t) | c2(t-1)]
        h_new = o_p * jnp.tanh(c_new)             # one tanh for both cells
        return h_new, c_new

    # ---- step 0 (skew prologue): h = c = 0, so gates come straight from
    #      addend[0]; only the layer-1 half of the new state is kept ---------
    zeros = jnp.zeros((B, 2 * H), jnp.float32)
    h_pack, c_pack = cell(addend_rows[0], zeros)
    l1mask = l1mask_ref[...]
    h_pack = h_pack * l1mask                      # [h1(0) | 0]
    c_pack = c_pack * l1mask                      # [c1(0) | 0]

    # ---- skewed steps 1..T (unrolled, static): one fused MXU push computes
    #      gates1(t) on layer-1 lanes and gates2(t-1) on layer-2 lanes -------
    for t in range(1, T + 1):
        raw = jnp.dot(h_pack, w_rec, preferred_element_type=jnp.float32)
        add = addend_rows[t] if t < T else bias_last
        h_pack, c_pack = cell(raw + add, c_pack)
        # h_pack = [h1(t) | h2(t-1)]; stash whole pack (head zeroes h1 rows).
        # Off the critical path: overlaps with the next step's matmul.
        h_buf_ref[(t - 1) * B:t * B, :] = h_pack

    # ---- hoisted output head: one matmul + one lane-dense slab store -------
    logits_ref[...] = (jnp.dot(h_buf_ref[...], wout_ref[...],
                               preferred_element_type=jnp.float32)
                       + bout_ref[...])


# ----------------------------- wrapper: fused-weight construction ------------
def build_fused(params):
    """Assemble skew-fused, gate-interleaved, sigmoid-prescaled weights."""
    H, V = HID, VOCAB

    def split4(w):  # (..., 4H) -> i, f, g, o  (PyTorch gate order)
        return (w[..., 0:H], w[..., H:2 * H], w[..., 2 * H:3 * H], w[..., 3 * H:4 * H])

    wih1_i, wih1_f, wih1_g, wih1_o = split4(params["wih1"])
    whh1_i, whh1_f, whh1_g, whh1_o = split4(params["whh1"])
    wih2_i, wih2_f, wih2_g, wih2_o = split4(params["wih2"])
    whh2_i, whh2_f, whh2_g, whh2_o = split4(params["whh2"])
    b1_i, b1_f, b1_g, b1_o = split4(params["b1"])
    b2_i, b2_f, b2_g, b2_o = split4(params["b2"])

    E = params["wih1"].shape[0]
    zE = jnp.zeros((E, H), jnp.float32)
    zH = jnp.zeros((H, H), jnp.float32)
    s = 0.5  # sigmoid-lane prescale (tanh identity)

    # Column block order: [i1, i2, f1, f2, g1, g2, o1, o2]
    w_in = jnp.concatenate(
        [s * wih1_i, zE, s * wih1_f, zE, wih1_g, zE, s * wih1_o, zE], axis=1)
    b_in = jnp.concatenate(
        [s * b1_i, s * b2_i, s * b1_f, s * b2_f, b1_g, b2_g, s * b1_o, s * b2_o],
        axis=1)
    w_rec_h1 = jnp.concatenate(      # rows multiplied by h1(t-1)
        [s * whh1_i, s * wih2_i, s * whh1_f, s * wih2_f,
         whh1_g, wih2_g, s * whh1_o, s * wih2_o], axis=1)
    w_rec_h2 = jnp.concatenate(      # rows multiplied by h2(t-2)
        [zH, s * whh2_i, zH, s * whh2_f, zH, whh2_g, zH, s * whh2_o], axis=1)
    w_rec = jnp.concatenate([w_rec_h1, w_rec_h2], axis=0)        # (2H, 8H)

    one = jnp.ones((1, H), jnp.float32)
    zro = jnp.zeros((1, H), jnp.float32)
    fix_mul = jnp.concatenate([0.5 * one] * 4 + [one, one] + [0.5 * one] * 2, axis=1)
    fix_add = jnp.concatenate([0.5 * one] * 4 + [zro, zro] + [0.5 * one] * 2, axis=1)
    l1mask = jnp.concatenate([one, zro], axis=1)                  # (1, 2H)

    # Lane-dense padded head; zero rows for the h1 half of the stored packs.
    wout_big = jnp.zeros((2 * H, VPAD), jnp.float32).at[H:, :V].set(params["wout"])
    bout_pad = jnp.zeros((1, VPAD), jnp.float32).at[:, :V].set(params["bout"])
    return dict(w_in=w_in, b_in=b_in, w_rec=w_rec, fix_mul=fix_mul,
                fix_add=fix_add, l1mask=l1mask, wout=wout_big, bout=bout_pad)


def lstm_forward_pallas(emb_2d, fused, *, T, B, H):
    """emb_2d: [T*B, E] float32 time-major embeddings -> [T*B, VPAD] logits."""
    TB, E = emb_2d.shape
    full = lambda shape: pl.BlockSpec(shape, lambda i: (0,) * len(shape))
    kernel = functools.partial(lstm_kernel, T=T, B=B, H=H)

    # TODO(synk): if batch grows, add a leading batch grid axis with
    # dimension_semantics=("parallel", "arbitrary") so both v7x TensorCores
    # split the work; at B=2 a single grid point is the right choice.
    return pl.pallas_call(
        kernel,
        out_shape=jax.ShapeDtypeStruct((TB, VPAD), jnp.float32),
        grid=(1,),
        in_specs=[
            full((TB, E)),
            full((E, 8 * H)), full((1, 8 * H)),
            full((2 * H, 8 * H)),
            full((1, 8 * H)), full((1, 8 * H)),
            full((1, 2 * H)),
            full((2 * H, VPAD)), full((1, VPAD)),
        ],
        out_specs=full((TB, VPAD)),
        scratch_shapes=[pltpu.VMEM((TB, 2 * H), jnp.float32)],
        compiler_params=pltpu.CompilerParams(
            dimension_semantics=("arbitrary",)),
    )(emb_2d, fused["w_in"], fused["b_in"], fused["w_rec"],
      fused["fix_mul"], fused["fix_add"], fused["l1mask"],
      fused["wout"], fused["bout"])


# ----------------------------- wrapper (glue) ---------------------------------
def lstm_module_forward(inputs, params, labels=None):
    """Mirrors LSTM.forward: inputs [B, T] int32 token ids -> {'loss', 'logits'}."""
    B, T = inputs.shape
    emb = params["embedding"][inputs]                           # [B, T, E] gather (glue)
    emb_tb = jnp.transpose(emb, (1, 0, 2)).reshape(T * B, -1).astype(jnp.float32)
    fused = build_fused(params)
    logits_pad = lstm_forward_pallas(emb_tb, fused, T=T, B=B, H=HID)   # [T*B, VPAD]
    V = VOCAB
    logits = jnp.transpose(logits_pad[:, :V].reshape(T, B, V), (1, 0, 2))  # [B, T, V]

    loss = 0
    if labels is not None:
        # shift: predict token t+1 from position t (plain-JAX cross entropy glue)
        shift_logits = logits[:, :-1, :].reshape(-1, V)
        shift_labels = labels[:, 1:].reshape(-1)
        logp = jax.nn.log_softmax(shift_logits, axis=-1)
        loss = -jnp.mean(jnp.take_along_axis(
            logp, shift_labels[:, None], axis=-1)[:, 0])
    return {"loss": loss, "logits": logits}


# ----------------------------- pure-JAX reference -----------------------------
def lstm_ref(inputs, params):
    emb = params["embedding"][inputs].astype(jnp.float32)    # [B,T,E]
    xs = jnp.transpose(emb, (1, 0, 2))                        # [T,B,E]
    B = xs.shape[1]
    H = params["whh1"].shape[0]

    def cell(x_t, h, c, wih, whh, b):
        g = x_t @ wih + h @ whh + b
        i = jax.nn.sigmoid(g[:, :H]); f = jax.nn.sigmoid(g[:, H:2 * H])
        gg = jnp.tanh(g[:, 2 * H:3 * H]); o = jax.nn.sigmoid(g[:, 3 * H:])
        c = f * c + i * gg
        return o * jnp.tanh(c), c

    def step(carry, x_t):
        h1, c1, h2, c2 = carry
        h1, c1 = cell(x_t, h1, c1, params["wih1"], params["whh1"], params["b1"])
        h2, c2 = cell(h1, h2, c2, params["wih2"], params["whh2"], params["b2"])
        return (h1, c1, h2, c2), h2

    z = jnp.zeros((B, H), jnp.float32)
    _, hs = lax.scan(step, (z, z, z, z), xs)                  # [T,B,H]
    logits = hs @ params["wout"] + params["bout"]             # [T,B,V]
    return jnp.transpose(logits, (1, 0, 2))                   # [B,T,V]


# ----------------------------- deterministic params ---------------------------
def init_params(key):
    ks = jax.random.split(key, 12)
    u = lambda k, shape, s: jax.random.uniform(k, shape, jnp.float32, -s, s)
    inv = 1.0 / jnp.sqrt(HID)
    return {
        # nn.Embedding: uniform(-0.1, 0.1)
        "embedding": u(ks[0], (VOCAB, EMB), 0.1),
        # nn.LSTM layer 1 (weights stored pre-transposed: [in, 4H]);
        # b = bias_ih + bias_hh merged into one [1, 4H] term
        "wih1": u(ks[1], (EMB, 4 * HID), inv),
        "whh1": u(ks[2], (HID, 4 * HID), inv),
        "b1":   u(ks[3], (1, 4 * HID), inv) + u(ks[4], (1, 4 * HID), inv),
        # nn.LSTM layer 2
        "wih2": u(ks[5], (HID, 4 * HID), inv),
        "whh2": u(ks[6], (HID, 4 * HID), inv),
        "b2":   u(ks[7], (1, 4 * HID), inv) + u(ks[8], (1, 4 * HID), inv),
        # nn.Linear head: weight ~ N(0, 0.01) (init_weights), bias default uniform
        "wout": 0.01 * jax.random.normal(ks[9], (HID, VOCAB), jnp.float32),
        "bout": u(ks[10], (1, VOCAB), inv),
    }


# ----------------------------- main -------------------------------------------
if __name__ == "__main__":
    key = jax.random.PRNGKey(0)
    pkey, ikey, lkey = jax.random.split(key, 3)
    params = init_params(pkey)

    inputs = jax.random.randint(ikey, (BATCH, SEQ), 0, VOCAB, dtype=jnp.int32)
    labels = jax.random.randint(lkey, (BATCH, SEQ), 0, VOCAB, dtype=jnp.int32)

    out = lstm_module_forward(inputs, params, labels=labels)
    logits = jax.block_until_ready(out["logits"])
    loss = jax.block_until_ready(out["loss"])

    ref = lstm_ref(inputs, params)
    assert logits.shape == (BATCH, SEQ, VOCAB), logits.shape
    assert jnp.allclose(logits, ref, rtol=2e-3, atol=2e-3), "mismatch vs JAX reference"
    assert jnp.isfinite(loss), "loss not finite"

    print("KERNEL_OK")
</pallas_src>

<mosaic_0001>
module attributes {stable_mosaic.version = 11 : i64} {
  func.func @lstm_kernel(%arg0: i32, %arg1: memref<16x32xf32, #tpu.memory_space<vmem>>, %arg2: memref<32x256xf32, #tpu.memory_space<vmem>>, %arg3: memref<1x256xf32, #tpu.memory_space<vmem>>, %arg4: memref<64x256xf32, #tpu.memory_space<vmem>>, %arg5: memref<1x256xf32, #tpu.memory_space<vmem>>, %arg6: memref<1x256xf32, #tpu.memory_space<vmem>>, %arg7: memref<1x64xf32, #tpu.memory_space<vmem>>, %arg8: memref<64x128xf32, #tpu.memory_space<vmem>>, %arg9: memref<1x128xf32, #tpu.memory_space<vmem>>, %arg10: memref<16x128xf32, #tpu.memory_space<vmem>>, %arg11: memref<16x64xf32, #tpu.memory_space<vmem>>) attributes {dimension_semantics = [#tpu.dimension_semantics<arbitrary>], iteration_bounds = array<i64: 1>, scalar_prefetch = 0 : i64, scratch_operands = 1 : i64, tpu.core_type = #tpu.core_type<tc>, window_params = [{pipeline_mode = #tpu.pipeline_mode<synchronous>, transform_indices = @transform_0, window_bounds = array<i64: 16, 32>}, {pipeline_mode = #tpu.pipeline_mode<synchronous>, transform_indices = @transform_1, window_bounds = array<i64: 32, 256>}, {pipeline_mode = #tpu.pipeline_mode<synchronous>, transform_indices = @transform_2, window_bounds = array<i64: 1, 256>}, {pipeline_mode = #tpu.pipeline_mode<synchronous>, transform_indices = @transform_3, window_bounds = array<i64: 64, 256>}, {pipeline_mode = #tpu.pipeline_mode<synchronous>, transform_indices = @transform_4, window_bounds = array<i64: 1, 256>}, {pipeline_mode = #tpu.pipeline_mode<synchronous>, transform_indices = @transform_5, window_bounds = array<i64: 1, 256>}, {pipeline_mode = #tpu.pipeline_mode<synchronous>, transform_indices = @transform_6, window_bounds = array<i64: 1, 64>}, {pipeline_mode = #tpu.pipeline_mode<synchronous>, transform_indices = @transform_7, window_bounds = array<i64: 64, 128>}, {pipeline_mode = #tpu.pipeline_mode<synchronous>, transform_indices = @transform_8, window_bounds = array<i64: 1, 128>}, {pipeline_mode = #tpu.pipeline_mode<synchronous>, transform_indices = @transform_9, window_bounds = array<i64: 16, 128>}]} {
    %c0 = arith.constant 0 : index
    %c0_0 = arith.constant 0 : index
    %0 = vector.load %arg4[%c0, %c0_0] : memref<64x256xf32, #tpu.memory_space<vmem>>, vector<64x256xf32>
    %c0_1 = arith.constant 0 : index
    %c0_2 = arith.constant 0 : index
    %1 = vector.load %arg5[%c0_1, %c0_2] : memref<1x256xf32, #tpu.memory_space<vmem>>, vector<1x256xf32>
    %c0_3 = arith.constant 0 : index
    %c0_4 = arith.constant 0 : index
    %2 = vector.load %arg6[%c0_3, %c0_4] : memref<1x256xf32, #tpu.memory_space<vmem>>, vector<1x256xf32>
    %c0_5 = arith.constant 0 : index
    %c0_6 = arith.constant 0 : index
    %3 = vector.load %arg1[%c0_5, %c0_6] : memref<16x32xf32, #tpu.memory_space<vmem>>, vector<16x32xf32>
    %c0_7 = arith.constant 0 : index
    %c0_8 = arith.constant 0 : index
    %4 = vector.load %arg2[%c0_7, %c0_8] : memref<32x256xf32, #tpu.memory_space<vmem>>, vector<32x256xf32>
    %cst = arith.constant dense<0.000000e+00> : vector<16x256xf32>
    %5 = tpu.matmul %3, %4, %cst {dimension_numbers = #tpu.dot_dimension_numbers<[1], [0], [0], [1], [0, 0, 1, 1], [], []>} : vector<16x32xf32>, vector<32x256xf32>, vector<16x256xf32> -> vector<16x256xf32>
    %c0_9 = arith.constant 0 : index
    %c0_10 = arith.constant 0 : index
    %6 = vector.load %arg3[%c0_9, %c0_10] : memref<1x256xf32, #tpu.memory_space<vmem>>, vector<1x256xf32>
    %7 = vector.broadcast %6 : vector<1x256xf32> to vector<16x256xf32>
    %8 = arith.addf %5, %7 : vector<16x256xf32>
    %9 = vector.extract_strided_slice %8 {offsets = [0, 0], sizes = [2, 256], strides = [1, 1]} : vector<16x256xf32> to vector<2x256xf32>
    %10 = vector.extract_strided_slice %8 {offsets = [2, 0], sizes = [2, 256], strides = [1, 1]} : vector<16x256xf32> to vector<2x256xf32>
    %11 = vector.extract_strided_slice %8 {offsets = [4, 0], sizes = [2, 256], strides = [1, 1]} : vector<16x256xf32> to vector<2x256xf32>
    %12 = vector.extract_strided_slice %8 {offsets = [6, 0], sizes = [2, 256], strides = [1, 1]} : vector<16x256xf32> to vector<2x256xf32>
    %13 = vector.extract_strided_slice %8 {offsets = [8, 0], sizes = [2, 256], strides = [1, 1]} : vector<16x256xf32> to vector<2x256xf32>
    %14 = vector.extract_strided_slice %8 {offsets = [10, 0], sizes = [2, 256], strides = [1, 1]} : vector<16x256xf32> to vector<2x256xf32>
    %15 = vector.extract_strided_slice %8 {offsets = [12, 0], sizes = [2, 256], strides = [1, 1]} : vector<16x256xf32> to vector<2x256xf32>
    %16 = vector.extract_strided_slice %8 {offsets = [14, 0], sizes = [2, 256], strides = [1, 1]} : vector<16x256xf32> to vector<2x256xf32>
    %c0_11 = arith.constant 0 : index
    %c0_12 = arith.constant 0 : index
    %17 = vector.load %arg3[%c0_11, %c0_12] : memref<1x256xf32, #tpu.memory_space<vmem>>, vector<1x256xf32>
    %18 = vector.shape_cast %17 : vector<1x256xf32> to vector<1x256xf32>
    %19 = vector.broadcast %18 : vector<1x256xf32> to vector<2x256xf32>
    %cst_13 = arith.constant 0.000000e+00 : f32
    %20 = vector.broadcast %cst_13 : f32 to vector<2x64xf32>
    %21 = math.tanh %9 : vector<2x256xf32>
    %22 = vector.broadcast %1 : vector<1x256xf32> to vector<2x256xf32>
    %23 = arith.mulf %21, %22 : vector<2x256xf32>
    %24 = vector.broadcast %2 : vector<1x256xf32> to vector<2x256xf32>
    %25 = arith.addf %23, %24 : vector<2x256xf32>
    %26 = vector.extract_strided_slice %25 {offsets = [0, 0], sizes = [2, 64], strides = [1, 1]} : vector<2x256xf32> to vector<2x64xf32>
    %27 = vector.extract_strided_slice %25 {offsets = [0, 64], sizes = [2, 64], strides = [1, 1]} : vector<2x256xf32> to vector<2x64xf32>
    %28 = vector.extract_strided_slice %25 {offsets = [0, 128], sizes = [2, 64], strides = [1, 1]} : vector<2x256xf32> to vector<2x64xf32>
    %29 = vector.extract_strided_slice %25 {offsets = [0, 192], sizes = [2, 64], strides = [1, 1]} : vector<2x256xf32> to vector<2x64xf32>
    %30 = arith.mulf %27, %20 : vector<2x64xf32>
    %31 = arith.mulf %26, %28 : vector<2x64xf32>
    %32 = arith.addf %30, %31 : vector<2x64xf32>
    %33 = math.tanh %32 : vector<2x64xf32>
    %34 = arith.mulf %29, %33 : vector<2x64xf32>
    %c0_14 = arith.constant 0 : index
    %c0_15 = arith.constant 0 : index
    %35 = vector.load %arg7[%c0_14, %c0_15] : memref<1x64xf32, #tpu.memory_space<vmem>>, vector<1x64xf32>
    %36 = vector.broadcast %35 : vector<1x64xf32> to vector<2x64xf32>
    %37 = arith.mulf %34, %36 : vector<2x64xf32>
    %38 = vector.broadcast %35 : vector<1x64xf32> to vector<2x64xf32>
    %39 = arith.mulf %32, %38 : vector<2x64xf32>
    %cst_16 = arith.constant dense<0.000000e+00> : vector<2x256xf32>
    %40 = tpu.matmul %37, %0, %cst_16 {dimension_numbers = #tpu.dot_dimension_numbers<[1], [0], [0], [1], [0, 0, 1, 1], [], []>} : vector<2x64xf32>, vector<64x256xf32>, vector<2x256xf32> -> vector<2x256xf32>
    %41 = arith.addf %40, %10 : vector<2x256xf32>
    %42 = math.tanh %41 : vector<2x256xf32>
    %43 = vector.broadcast %1 : vector<1x256xf32> to vector<2x256xf32>
    %44 = arith.mulf %42, %43 : vector<2x256xf32>
    %45 = vector.broadcast %2 : vector<1x256xf32> to vector<2x256xf32>
    %46 = arith.addf %44, %45 : vector<2x256xf32>
    %47 = vector.extract_strided_slice %46 {offsets = [0, 0], sizes = [2, 64], strides = [1, 1]} : vector<2x256xf32> to vector<2x64xf32>
    %48 = vector.extract_strided_slice %46 {offsets = [0, 64], sizes = [2, 64], strides = [1, 1]} : vector<2x256xf32> to vector<2x64xf32>
    %49 = vector.extract_strided_slice %46 {offsets = [0, 128], sizes = [2, 64], strides = [1, 1]} : vector<2x256xf32> to vector<2x64xf32>
    %50 = vector.extract_strided_slice %46 {offsets = [0, 192], sizes = [2, 64], strides = [1, 1]} : vector<2x256xf32> to vector<2x64xf32>
    %51 = arith.mulf %48, %39 : vector<2x64xf32>
    %52 = arith.mulf %47, %49 : vector<2x64xf32>
    %53 = arith.addf %51, %52 : vector<2x64xf32>
    %54 = math.tanh %53 : vector<2x64xf32>
    %55 = arith.mulf %50, %54 : vector<2x64xf32>
    %c0_17 = arith.constant 0 : index
    %c0_18 = arith.constant 0 : index
    %56 = vector.load %arg11[%c0_17, %c0_18] : memref<16x64xf32, #tpu.memory_space<vmem>>, vector<2x64xf32>
    tpu.vector_store %arg11[%c0_17, %c0_18], %55 {strides = array<i32>} : memref<16x64xf32, #tpu.memory_space<vmem>>, vector<2x64xf32>,
    %cst_19 = arith.constant dense<0.000000e+00> : vector<2x256xf32>
    %57 = tpu.matmul %55, %0, %cst_19 {dimension_numbers = #tpu.dot_dimension_numbers<[1], [0], [0], [1], [0, 0, 1, 1], [], []>} : vector<2x64xf32>, vector<64x256xf32>, vector<2x256xf32> -> vector<2x256xf32>
    %58 = arith.addf %57, %11 : vector<2x256xf32>
    %59 = math.tanh %58 : vector<2x256xf32>
    %60 = vector.broadcast %1 : vector<1x256xf32> to vector<2x256xf32>
    %61 = arith.mulf %59, %60 : vector<2x256xf32>
    %62 = vector.broadcast %2 : vector<1x256xf32> to vector<2x256xf32>
    %63 = arith.addf %61, %62 : vector<2x256xf32>
    %64 = vector.extract_strided_slice %63 {offsets = [0, 0], sizes = [2, 64], strides = [1, 1]} : vector<2x256xf32> to vector<2x64xf32>
    %65 = vector.extract_strided_slice %63 {offsets = [0, 64], sizes = [2, 64], strides = [1, 1]} : vector<2x256xf32> to vector<2x64xf32>
    %66 = vector.extract_strided_slice %63 {offsets = [0, 128], sizes = [2, 64], strides = [1, 1]} : vector<2x256xf32> to vector<2x64xf32>
    %67 = vector.extract_strided_slice %63 {offsets = [0, 192], sizes = [2, 64], strides = [1, 1]} : vector<2x256xf32> to vector<2x64xf32>
    %68 = arith.mulf %65, %53 : vector<2x64xf32>
    %69 = arith.mulf %64, %66 : vector<2x64xf32>
    %70 = arith.addf %68, %69 : vector<2x64xf32>
    %71 = math.tanh %70 : vector<2x64xf32>
    %72 = arith.mulf %67, %71 : vector<2x64xf32>
    %c2 = arith.constant 2 : index
    %c0_20 = arith.constant 0 : index
    %73 = vector.load %arg11[%c2, %c0_20] : memref<16x64xf32, #tpu.memory_space<vmem>>, vector<2x64xf32>
    tpu.vector_store %arg11[%c2, %c0_20], %72 {strides = array<i32>} : memref<16x64xf32, #tpu.memory_space<vmem>>, vector<2x64xf32>,
    %cst_21 = arith.constant dense<0.000000e+00> : vector<2x256xf32>
    %74 = tpu.matmul %72, %0, %cst_21 {dimension_numbers = #tpu.dot_dimension_numbers<[1], [0], [0], [1], [0, 0, 1, 1], [], []>} : vector<2x64xf32>, vector<64x256xf32>, vector<2x256xf32> -> vector<2x256xf32>
    %75 = arith.addf %74, %12 : vector<2x256xf32>
    %76 = math.tanh %75 : vector<2x256xf32>
    %77 = vector.broadcast %1 : vector<1x256xf32> to vector<2x256xf32>
    %78 = arith.mulf %76, %77 : vector<2x256xf32>
    %79 = vector.broadcast %2 : vector<1x256xf32> to vector<2x256xf32>
    %80 = arith.addf %78, %79 : vector<2x256xf32>
    %81 = vector.extract_strided_slice %80 {offsets = [0, 0], sizes = [2, 64], strides = [1, 1]} : vector<2x256xf32> to vector<2x64xf32>
    %82 = vector.extract_strided_slice %80 {offsets = [0, 64], sizes = [2, 64], strides = [1, 1]} : vector<2x256xf32> to vector<2x64xf32>
    %83 = vector.extract_strided_slice %80 {offsets = [0, 128], sizes = [2, 64], strides = [1, 1]} : vector<2x256xf32> to vector<2x64xf32>
    %84 = vector.extract_strided_slice %80 {offsets = [0, 192], sizes = [2, 64], strides = [1, 1]} : vector<2x256xf32> to vector<2x64xf32>
    %85 = arith.mulf %82, %70 : vector<2x64xf32>
    %86 = arith.mulf %81, %83 : vector<2x64xf32>
    %87 = arith.addf %85, %86 : vector<2x64xf32>
    %88 = math.tanh %87 : vector<2x64xf32>
    %89 = arith.mulf %84, %88 : vector<2x64xf32>
    %c4 = arith.constant 4 : index
    %c0_22 = arith.constant 0 : index
    %90 = vector.load %arg11[%c4, %c0_22] : memref<16x64xf32, #tpu.memory_space<vmem>>, vector<2x64xf32>
    tpu.vector_store %arg11[%c4, %c0_22], %89 {strides = array<i32>} : memref<16x64xf32, #tpu.memory_space<vmem>>, vector<2x64xf32>,
    %cst_23 = arith.constant dense<0.000000e+00> : vector<2x256xf32>
    %91 = tpu.matmul %89, %0, %cst_23 {dimension_numbers = #tpu.dot_dimension_numbers<[1], [0], [0], [1], [0, 0, 1, 1], [], []>} : vector<2x64xf32>, vector<64x256xf32>, vector<2x256xf32> -> vector<2x256xf32>
    %92 = arith.addf %91, %13 : vector<2x256xf32>
    %93 = math.tanh %92 : vector<2x256xf32>
    %94 = vector.broadcast %1 : vector<1x256xf32> to vector<2x256xf32>
    %95 = arith.mulf %93, %94 : vector<2x256xf32>
    %96 = vector.broadcast %2 : vector<1x256xf32> to vector<2x256xf32>
    %97 = arith.addf %95, %96 : vector<2x256xf32>
    %98 = vector.extract_strided_slice %97 {offsets = [0, 0], sizes = [2, 64], strides = [1, 1]} : vector<2x256xf32> to vector<2x64xf32>
    %99 = vector.extract_strided_slice %97 {offsets = [0, 64], sizes = [2, 64], strides = [1, 1]} : vector<2x256xf32> to vector<2x64xf32>
    %100 = vector.extract_strided_slice %97 {offsets = [0, 128], sizes = [2, 64], strides = [1, 1]} : vector<2x256xf32> to vector<2x64xf32>
    %101 = vector.extract_strided_slice %97 {offsets = [0, 192], sizes = [2, 64], strides = [1, 1]} : vector<2x256xf32> to vector<2x64xf32>
    %102 = arith.mulf %99, %87 : vector<2x64xf32>
    %103 = arith.mulf %98, %100 : vector<2x64xf32>
    %104 = arith.addf %102, %103 : vector<2x64xf32>
    %105 = math.tanh %104 : vector<2x64xf32>
    %106 = arith.mulf %101, %105 : vector<2x64xf32>
    %c6 = arith.constant 6 : index
    %c0_24 = arith.constant 0 : index
    %107 = vector.load %arg11[%c6, %c0_24] : memref<16x64xf32, #tpu.memory_space<vmem>>, vector<2x64xf32>
    tpu.vector_store %arg11[%c6, %c0_24], %106 {strides = array<i32>} : memref<16x64xf32, #tpu.memory_space<vmem>>, vector<2x64xf32>,
    %cst_25 = arith.constant dense<0.000000e+00> : vector<2x256xf32>
    %108 = tpu.matmul %106, %0, %cst_25 {dimension_numbers = #tpu.dot_dimension_numbers<[1], [0], [0], [1], [0, 0, 1, 1], [], []>} : vector<2x64xf32>, vector<64x256xf32>, vector<2x256xf32> -> vector<2x256xf32>
    %109 = arith.addf %108, %14 : vector<2x256xf32>
    %110 = math.tanh %109 : vector<2x256xf32>
    %111 = vector.broadcast %1 : vector<1x256xf32> to vector<2x256xf32>
    %112 = arith.mulf %110, %111 : vector<2x256xf32>
    %113 = vector.broadcast %2 : vector<1x256xf32> to vector<2x256xf32>
    %114 = arith.addf %112, %113 : vector<2x256xf32>
    %115 = vector.extract_strided_slice %114 {offsets = [0, 0], sizes = [2, 64], strides = [1, 1]} : vector<2x256xf32> to vector<2x64xf32>
    %116 = vector.extract_strided_slice %114 {offsets = [0, 64], sizes = [2, 64], strides = [1, 1]} : vector<2x256xf32> to vector<2x64xf32>
    %117 = vector.extract_strided_slice %114 {offsets = [0, 128], sizes = [2, 64], strides = [1, 1]} : vector<2x256xf32> to vector<2x64xf32>
    %118 = vector.extract_strided_slice %114 {offsets = [0, 192], sizes = [2, 64], strides = [1, 1]} : vector<2x256xf32> to vector<2x64xf32>
    %119 = arith.mulf %116, %104 : vector<2x64xf32>
    %120 = arith.mulf %115, %117 : vector<2x64xf32>
    %121 = arith.addf %119, %120 : vector<2x64xf32>
    %122 = math.tanh %121 : vector<2x64xf32>
    %123 = arith.mulf %118, %122 : vector<2x64xf32>
    %c8 = arith.constant 8 : index
    %c0_26 = arith.constant 0 : index
    %124 = vector.load %arg11[%c8, %c0_26] : memref<16x64xf32, #tpu.memory_space<vmem>>, vector<2x64xf32>
    tpu.vector_store %arg11[%c8, %c0_26], %123 {strides = array<i32>} : memref<16x64xf32, #tpu.memory_space<vmem>>, vector<2x64xf32>,
    %cst_27 = arith.constant dense<0.000000e+00> : vector<2x256xf32>
    %125 = tpu.matmul %123, %0, %cst_27 {dimension_numbers = #tpu.dot_dimension_numbers<[1], [0], [0], [1], [0, 0, 1, 1], [], []>} : vector<2x64xf32>, vector<64x256xf32>, vector<2x256xf32> -> vector<2x256xf32>
    %126 = arith.addf %125, %15 : vector<2x256xf32>
    %127 = math.tanh %126 : vector<2x256xf32>
    %128 = vector.broadcast %1 : vector<1x256xf32> to vector<2x256xf32>
    %129 = arith.mulf %127, %128 : vector<2x256xf32>
    %130 = vector.broadcast %2 : vector<1x256xf32> to vector<2x256xf32>
    %131 = arith.addf %129, %130 : vector<2x256xf32>
    %132 = vector.extract_strided_slice %131 {offsets = [0, 0], sizes = [2, 64], strides = [1, 1]} : vector<2x256xf32> to vector<2x64xf32>
    %133 = vector.extract_strided_slice %131 {offsets = [0, 64], sizes = [2, 64], strides = [1, 1]} : vector<2x256xf32> to vector<2x64xf32>
    %134 = vector.extract_strided_slice %131 {offsets = [0, 128], sizes = [2, 64], strides = [1, 1]} : vector<2x256xf32> to vector<2x64xf32>
    %135 = vector.extract_strided_slice %131 {offsets = [0, 192], sizes = [2, 64], strides = [1, 1]} : vector<2x256xf32> to vector<2x64xf32>
    %136 = arith.mulf %133, %121 : vector<2x64xf32>
    %137 = arith.mulf %132, %134 : vector<2x64xf32>
    %138 = arith.addf %136, %137 : vector<2x64xf32>
    %139 = math.tanh %138 : vector<2x64xf32>
    %140 = arith.mulf %135, %139 : vector<2x64xf32>
    %c10 = arith.constant 10 : index
    %c0_28 = arith.constant 0 : index
    %141 = vector.load %arg11[%c10, %c0_28] : memref<16x64xf32, #tpu.memory_space<vmem>>, vector<2x64xf32>
    tpu.vector_store %arg11[%c10, %c0_28], %140 {strides = array<i32>} : memref<16x64xf32, #tpu.memory_space<vmem>>, vector<2x64xf32>,
    %cst_29 = arith.constant dense<0.000000e+00> : vector<2x256xf32>
    %142 = tpu.matmul %140, %0, %cst_29 {dimension_numbers = #tpu.dot_dimension_numbers<[1], [0], [0], [1], [0, 0, 1, 1], [], []>} : vector<2x64xf32>, vector<64x256xf32>, vector<2x256xf32> -> vector<2x256xf32>
    %143 = arith.addf %142, %16 : vector<2x256xf32>
    %144 = math.tanh %143 : vector<2x256xf32>
    %145 = vector.broadcast %1 : vector<1x256xf32> to vector<2x256xf32>
    %146 = arith.mulf %144, %145 : vector<2x256xf32>
    %147 = vector.broadcast %2 : vector<1x256xf32> to vector<2x256xf32>
    %148 = arith.addf %146, %147 : vector<2x256xf32>
    %149 = vector.extract_strided_slice %148 {offsets = [0, 0], sizes = [2, 64], strides = [1, 1]} : vector<2x256xf32> to vector<2x64xf32>
    %150 = vector.extract_strided_slice %148 {offsets = [0, 64], sizes = [2, 64], strides = [1, 1]} : vector<2x256xf32> to vector<2x64xf32>
    %151 = vector.extract_strided_slice %148 {offsets = [0, 128], sizes = [2, 64], strides = [1, 1]} : vector<2x256xf32> to vector<2x64xf32>
    %152 = vector.extract_strided_slice %148 {offsets = [0, 192], sizes = [2, 64], strides = [1, 1]} : vector<2x256xf32> to vector<2x64xf32>
    %153 = arith.mulf %150, %138 : vector<2x64xf32>
    %154 = arith.mulf %149, %151 : vector<2x64xf32>
    %155 = arith.addf %153, %154 : vector<2x64xf32>
    %156 = math.tanh %155 : vector<2x64xf32>
    %157 = arith.mulf %152, %156 : vector<2x64xf32>
    %c12 = arith.constant 12 : index
    %c0_30 = arith.constant 0 : index
    %158 = vector.load %arg11[%c12, %c0_30] : memref<16x64xf32, #tpu.memory_space<vmem>>, vector<2x64xf32>
    tpu.vector_store %arg11[%c12, %c0_30], %157 {strides = array<i32>} : memref<16x64xf32, #tpu.memory_space<vmem>>, vector<2x64xf32>,
    %cst_31 = arith.constant dense<0.000000e+00> : vector<2x256xf32>
    %159 = tpu.matmul %157, %0, %cst_31 {dimension_numbers = #tpu.dot_dimension_numbers<[1], [0], [0], [1], [0, 0, 1, 1], [], []>} : vector<2x64xf32>, vector<64x256xf32>, vector<2x256xf32> -> vector<2x256xf32>
    %160 = arith.addf %159, %19 : vector<2x256xf32>
    %161 = math.tanh %160 : vector<2x256xf32>
    %162 = vector.broadcast %1 : vector<1x256xf32> to vector<2x256xf32>
    %163 = arith.mulf %161, %162 : vector<2x256xf32>
    %164 = vector.broadcast %2 : vector<1x256xf32> to vector<2x256xf32>
    %165 = arith.addf %163, %164 : vector<2x256xf32>
    %166 = vector.extract_strided_slice %165 {offsets = [0, 0], sizes = [2, 64], strides = [1, 1]} : vector<2x256xf32> to vector<2x64xf32>
    %167 = vector.extract_strided_slice %165 {offsets = [0, 64], sizes = [2, 64], strides = [1, 1]} : vector<2x256xf32> to vector<2x64xf32>
    %168 = vector.extract_strided_slice %165 {offsets = [0, 128], sizes = [2, 64], strides = [1, 1]} : vector<2x256xf32> to vector<2x64xf32>
    %169 = vector.extract_strided_slice %165 {offsets = [0, 192], sizes = [2, 64], strides = [1, 1]} : vector<2x256xf32> to vector<2x64xf32>
    %170 = arith.mulf %167, %155 : vector<2x64xf32>
    %171 = arith.mulf %166, %168 : vector<2x64xf32>
    %172 = arith.addf %170, %171 : vector<2x64xf32>
    %173 = math.tanh %172 : vector<2x64xf32>
    %174 = arith.mulf %169, %173 : vector<2x64xf32>
    %c14 = arith.constant 14 : index
    %c0_32 = arith.constant 0 : index
    %175 = vector.load %arg11[%c14, %c0_32] : memref<16x64xf32, #tpu.memory_space<vmem>>, vector<2x64xf32>
    tpu.vector_store %arg11[%c14, %c0_32], %174 {strides = array<i32>} : memref<16x64xf32, #tpu.memory_space<vmem>>, vector<2x64xf32>,
    %c0_33 = arith.constant 0 : index
    %c0_34 = arith.constant 0 : index
    %176 = vector.load %arg11[%c0_33, %c0_34] : memref<16x64xf32, #tpu.memory_space<vmem>>, vector<16x64xf32>
    %c0_35 = arith.constant 0 : index
    %c0_36 = arith.constant 0 : index
    %177 = vector.load %arg8[%c0_35, %c0_36] : memref<64x128xf32, #tpu.memory_space<vmem>>, vector<64x128xf32>
    %cst_37 = arith.constant dense<0.000000e+00> : vector<16x128xf32>
    %178 = tpu.matmul %176, %177, %cst_37 {dimension_numbers = #tpu.dot_dimension_numbers<[1], [0], [0], [1], [0, 0, 1, 1], [], []>} : vector<16x64xf32>, vector<64x128xf32>, vector<16x128xf32> -> vector<16x128xf32>
    %c0_38 = arith.constant 0 : index
    %c0_39 = arith.constant 0 : index
    %179 = vector.load %arg9[%c0_38, %c0_39] : memref<1x128xf32, #tpu.memory_space<vmem>>, vector<1x128xf32>
    %180 = vector.broadcast %179 : vector<1x128xf32> to vector<16x128xf32>
    %181 = arith.addf %178, %180 : vector<16x128xf32>
    %c0_40 = arith.constant 0 : index
    %c0_41 = arith.constant 0 : index
    %182 = vector.load %arg10[%c0_40, %c0_41] : memref<16x128xf32, #tpu.memory_space<vmem>>, vector<16x128xf32>
    tpu.vector_store %arg10[%c0_40, %c0_41], %181 {strides = array<i32>} : memref<16x128xf32, #tpu.memory_space<vmem>>, vector<16x128xf32>,
    return
  }
  func.func @transform_0(%arg0: i32) -> (i32, i32) {
    %c0_i32 = arith.constant 0 : i32
    %c0_i32_0 = arith.constant 0 : i32
    %c0_i32_1 = arith.constant 0 : i32
    return %c0_i32, %c0_i32_0 : i32, i32
  }
  func.func @transform_1(%arg0: i32) -> (i32, i32) {
    %c0_i32 = arith.constant 0 : i32
    %c0_i32_0 = arith.constant 0 : i32
    %c0_i32_1 = arith.constant 0 : i32
    return %c0_i32, %c0_i32_0 : i32, i32
  }
  func.func @transform_2(%arg0: i32) -> (i32, i32) {
    %c0_i32 = arith.constant 0 : i32
    %c0_i32_0 = arith.constant 0 : i32
    %c0_i32_1 = arith.constant 0 : i32
    return %c0_i32, %c0_i32_0 : i32, i32
  }
  func.func @transform_3(%arg0: i32) -> (i32, i32) {
    %c0_i32 = arith.constant 0 : i32
    %c0_i32_0 = arith.constant 0 : i32
    %c0_i32_1 = arith.constant 0 : i32
    return %c0_i32, %c0_i32_0 : i32, i32
  }
  func.func @transform_4(%arg0: i32) -> (i32, i32) {
    %c0_i32 = arith.constant 0 : i32
    %c0_i32_0 = arith.constant 0 : i32
    %c0_i32_1 = arith.constant 0 : i32
    return %c0_i32, %c0_i32_0 : i32, i32
  }
  func.func @transform_5(%arg0: i32) -> (i32, i32) {
    %c0_i32 = arith.constant 0 : i32
    %c0_i32_0 = arith.constant 0 : i32
    %c0_i32_1 = arith.constant 0 : i32
    return %c0_i32, %c0_i32_0 : i32, i32
  }
  func.func @transform_6(%arg0: i32) -> (i32, i32) {
    %c0_i32 = arith.constant 0 : i32
    %c0_i32_0 = arith.constant 0 : i32
    %c0_i32_1 = arith.constant 0 : i32
    return %c0_i32, %c0_i32_0 : i32, i32
  }
  func.func @transform_7(%arg0: i32) -> (i32, i32) {
    %c0_i32 = arith.constant 0 : i32
    %c0_i32_0 = arith.constant 0 : i32
    %c0_i32_1 = arith.constant 0 : i32
    return %c0_i32, %c0_i32_0 : i32, i32
  }
  func.func @transform_8(%arg0: i32) -> (i32, i32) {
    %c0_i32 = arith.constant 0 : i32
    %c0_i32_0 = arith.constant 0 : i32
    %c0_i32_1 = arith.constant 0 : i32
    return %c0_i32, %c0_i32_0 : i32, i32
  }
  func.func @transform_9(%arg0: i32) -> (i32, i32) {
    %c0_i32 = arith.constant 0 : i32
    %c0_i32_0 = arith.constant 0 : i32
    %c0_i32_1 = arith.constant 0 : i32
    return %c0_i32, %c0_i32_0 : i32, i32
  }
}

</mosaic_0001>

<llo_original>
// kernel: tpu_custom_call.1
$region0: #{tpu_custom_call.1}
  #allocation0 [shape = 'u32[]', space=smem, size = 0x4, offset = 0x4, fixed_abs, tag = 'smem constant byte address 0x4 - core index']
  #allocation1 [shape = 'u32[144,128]{1,0:T(1,128)}', space=vmem, size = 0x12000, scoped, tag = 'internal scratch']
  #allocation2 [shape = 'f32[16,64]{1,0:T(8,128)}', space=vmem, size = 0x2000, scoped, tag = 'scratch operand']
  %s0 = inlined_call_operand.hbm [shape: f32[16,32], index: 0, kind: input, shape index: {}]
  %s1 = inlined_call_operand.hbm [shape: f32[32,256], index: 1, kind: input, shape index: {}]
  %s2 = inlined_call_operand.vmem [shape: f32[1,256], index: 2, kind: input, shape index: {}]
  %s3 = inlined_call_operand.hbm [shape: f32[64,256], index: 3, kind: input, shape index: {}]
  %s4 = inlined_call_operand.vmem [shape: f32[1,256], index: 4, kind: input, shape index: {}]
  %s5 = inlined_call_operand.vmem [shape: f32[1,256], index: 5, kind: input, shape index: {}]
  %s6 = inlined_call_operand.vmem [shape: f32[1,64], index: 6, kind: input, shape index: {}]
  %s7 = inlined_call_operand.hbm [shape: f32[64,128], index: 7, kind: input, shape index: {}]
  %s8 = inlined_call_operand.vmem [shape: f32[1,128], index: 8, kind: input, shape index: {}]
  %s9 = inlined_call_operand.hbm [shape: f32[16,128], index: 9, kind: output, shape index: {}]
  %s10 = sld [smem:[#allocation0]]
  $region62: #{tpu_custom_call.1} parent=0
    _
  %s12 = ssub.s32 1, %s10
  %s13 = scalar_select 0, %s12, %s10
  $region1: #{tpu_custom_call.1} parent=0
    #allocation3 [shape = 'u8[8192]{0}', space=vmem, size = 0x2000, scoped, tag = 'input window, operand 0, single buffered']
    #allocation4 [shape = 's32[1]{0}', space=sflag, size = 0x4, scoped, tag = 'scoped memory for tpu_custom_call.1']
    #allocation5 [shape = 's32[1]{0}', space=sflag, size = 0x4, scoped, tag = 'scoped memory for tpu_custom_call.1']
    #allocation6 [shape = 'u8[32768]{0}', space=vmem, size = 0x8000, scoped, tag = 'input window, operand 1, single buffered']
    #allocation7 [shape = 's32[1]{0}', space=sflag, size = 0x4, scoped, tag = 'scoped memory for tpu_custom_call.1']
    #allocation8 [shape = 'u8[65536]{0}', space=vmem, size = 0x10000, scoped, tag = 'input window, operand 3, single buffered']
    #allocation9 [shape = 'u8[32768]{0}', space=vmem, size = 0x8000, scoped, tag = 'input window, operand 7, single buffered']
    #allocation10 [shape = 's32[1]{0}', space=sflag, size = 0x4, scoped, tag = 'scoped memory for tpu_custom_call.1']
    #allocation11 [shape = 'u8[8192]{0}', space=vmem, size = 0x2000, scoped, tag = 'output window, operand 0, single buffered']
    %14 = vsyncpa [#allocation4], 0
    %15 = vsyncpa [#allocation7], 0
    %16 = vsyncpa [#allocation10], 0
    %17 = vsyncpa [#allocation5], 0
    // Predicated region
    $region2: #{tpu_custom_call.1} parent=1 // pred_check
      _
    $region3: #{tpu_custom_call.1} parent=1 // pred_check_branch
      %19 = sbr.rel (0) target = $region5
    $region4: #{tpu_custom_call.1} parent=1 // pred_region
      %s21 = ssub.s32 256, 256
      %22 = vsyncadd [#allocation4], %s21
      %s23 = sshll.u32 [#allocation3], 4
      %s24 = int_to_ptr.vmem [resolvable:$true] %s23
      %29 = dma.hbm_to_vmem [thread:$0]  %s0, 256, %s24, [#allocation4], 128, 128, 8
    $region5: #{tpu_custom_call.1} parent=1 // pred_fallthru
      _
    // Predicated region
    $region6: #{tpu_custom_call.1} parent=1 // pred_check
      _
    $region7: #{tpu_custom_call.1} parent=1 // pred_check_branch
      %31 = sbr.rel (0) target = $region9
    $region8: #{tpu_custom_call.1} parent=1 // pred_region
      %s33 = ssub.s32 1024, 1024
      %34 = vsyncadd [#allocation7], %s33
      %s35 = sshll.u32 [#allocation6], 4
      %s36 = int_to_ptr.vmem [resolvable:$true] %s35
      %41 = dma.hbm_to_vmem [thread:$0]  %s1, 1024, %s36, [#allocation7], 256, 256, 16
    $region9: #{tpu_custom_call.1} parent=1 // pred_fallthru
      _
    // Predicated region
    $region10: #{tpu_custom_call.1} parent=1 // pred_check
      _
    $region11: #{tpu_custom_call.1} parent=1 // pred_check_branch
      %43 = sbr.rel (0) target = $region13
    $region12: #{tpu_custom_call.1} parent=1 // pred_region
      _
    $region13: #{tpu_custom_call.1} parent=1 // pred_fallthru
      _
    // Predicated region
    $region14: #{tpu_custom_call.1} parent=1 // pred_check
      _
    $region15: #{tpu_custom_call.1} parent=1 // pred_check_branch
      %45 = sbr.rel (0) target = $region17
    $region16: #{tpu_custom_call.1} parent=1 // pred_region
      %s47 = ssub.s32 2048, 2048
      %48 = vsyncadd [#allocation7], %s47
      %s49 = sshll.u32 [#allocation8], 4
      %s50 = int_to_ptr.vmem [resolvable:$true] %s49
      %55 = dma.hbm_to_vmem [thread:$0]  %s3, 2048, %s50, [#allocation7], 256, 256, 16
    $region17: #{tpu_custom_call.1} parent=1 // pred_fallthru
      _
    // Predicated region
    $region18: #{tpu_custom_call.1} parent=1 // pred_check
      _
    $region19: #{tpu_custom_call.1} parent=1 // pred_check_branch
      %57 = sbr.rel (0) target = $region21
    $region20: #{tpu_custom_call.1} parent=1 // pred_region
      _
    $region21: #{tpu_custom_call.1} parent=1 // pred_fallthru
      _
    // Predicated region
    $region22: #{tpu_custom_call.1} parent=1 // pred_check
      _
    $region23: #{tpu_custom_call.1} parent=1 // pred_check_branch
      %59 = sbr.rel (0) target = $region25
    $region24: #{tpu_custom_call.1} parent=1 // pred_region
      _
    $region25: #{tpu_custom_call.1} parent=1 // pred_fallthru
      _
    // Predicated region
    $region26: #{tpu_custom_call.1} parent=1 // pred_check
      _
    $region27: #{tpu_custom_call.1} parent=1 // pred_check_branch
      %61 = sbr.rel (0) target = $region29
    $region28: #{tpu_custom_call.1} parent=1 // pred_region
      _
    $region29: #{tpu_custom_call.1} parent=1 // pred_fallthru
      _
    // Predicated region
    $region30: #{tpu_custom_call.1} parent=1 // pred_check
      _
    $region31: #{tpu_custom_call.1} parent=1 // pred_check_branch
      %63 = sbr.rel (0) target = $region33
    $region32: #{tpu_custom_call.1} parent=1 // pred_region
      %s65 = ssub.s32 1024, 1024
      %66 = vsyncadd [#allocation10], %s65
      %s67 = sshll.u32 [#allocation9], 4
      %s68 = int_to_ptr.vmem [resolvable:$true] %s67
      %73 = dma.hbm_to_vmem [thread:$0]  %s7, 1024, %s68, [#allocation10], 128, 128, 8
    $region33: #{tpu_custom_call.1} parent=1 // pred_fallthru
      _
    // Predicated region
    $region34: #{tpu_custom_call.1} parent=1 // pred_check
      _
    $region35: #{tpu_custom_call.1} parent=1 // pred_check_branch
      %75 = sbr.rel (0) target = $region37
    $region36: #{tpu_custom_call.1} parent=1 // pred_region
      _
    $region37: #{tpu_custom_call.1} parent=1 // pred_fallthru
      _
    // Predicated region
    $region38: #{tpu_custom_call.1} parent=1 // pred_check
      _
    $region39: #{tpu_custom_call.1} parent=1 // pred_check_branch
      %77 = sbr.rel (0) target = $region41
    $region40: #{tpu_custom_call.1} parent=1 // pred_region
      %78 = dma.done [#allocation4], 256
    $region41: #{tpu_custom_call.1} parent=1 // pred_fallthru
      _
    // Predicated region
    $region42: #{tpu_custom_call.1} parent=1 // pred_check
      _
    $region43: #{tpu_custom_call.1} parent=1 // pred_check_branch
      %80 = sbr.rel (0) target = $region45
    $region44: #{tpu_custom_call.1} parent=1 // pred_region
      %81 = dma.done [#allocation7], 1024
    $region45: #{tpu_custom_call.1} parent=1 // pred_fallthru
      _
    // Predicated region
    $region46: #{tpu_custom_call.1} parent=1 // pred_check
      _
    $region47: #{tpu_custom_call.1} parent=1 // pred_check_branch
      %83 = sbr.rel (0) target = $region49
    $region48: #{tpu_custom_call.1} parent=1 // pred_region
      %84 = dma.done [#allocation7], 2048
    $region49: #{tpu_custom_call.1} parent=1 // pred_fallthru
      _
    // Predicated region
    $region50: #{tpu_custom_call.1} parent=1 // pred_check
      _
    $region51: #{tpu_custom_call.1} parent=1 // pred_check_branch
      %86 = sbr.rel (0) target = $region53
    $region52: #{tpu_custom_call.1} parent=1 // pred_region
      %87 = dma.done [#allocation10], 1024
    $region53: #{tpu_custom_call.1} parent=1 // pred_fallthru
      _
    %v88 = vld [vmem:[#allocation8] sm:$0xff]
    %v89 = vld [vmem:[#allocation8 + $0x8] sm:$0xff]
    %v90 = vld [vmem:[#allocation8 + $0x10] sm:$0xff]
    %v91 = vld [vmem:[#allocation8 + $0x18] sm:$0xff]
    %v92 = vld [vmem:[#allocation8 + $0x20] sm:$0xff]
    %v93 = vld [vmem:[#allocation8 + $0x28] sm:$0xff]
    %v94 = vld [vmem:[#allocation8 + $0x30] sm:$0xff]
    %v95 = vld [vmem:[#allocation8 + $0x38] sm:$0xff]
    %v96 = vld [vmem:[#allocation8 + $0x40] sm:$0xff]
    %v97 = vld [vmem:[#allocation8 + $0x48] sm:$0xff]
    %v98 = vld [vmem:[#allocation8 + $0x50] sm:$0xff]
    %v99 = vld [vmem:[#allocation8 + $0x58] sm:$0xff]
    %v100 = vld [vmem:[#allocation8 + $0x60] sm:$0xff]
    %v101 = vld [vmem:[#allocation8 + $0x68] sm:$0xff]
    %v102 = vld [vmem:[#allocation8 + $0x70] sm:$0xff]
    %v103 = vld [vmem:[#allocation8 + $0x78] sm:$0xff]
    %v104 = vld [vmem:[%s4] sm:$0x3]
    %v105 = vld [vmem:[%s5] sm:$0x3]
    %v106 = vld [vmem:[#allocation3] sm:$0xff]
    %v107 = vld [vmem:[#allocation3 + $0x8] sm:$0xff]
    %v108 = vld [vmem:[#allocation6] sm:$0xff]
    %v109 = vld [vmem:[#allocation6 + $0x8] sm:$0xff]
    %v110 = vld [vmem:[#allocation6 + $0x10] sm:$0xff]
    %v111 = vld [vmem:[#allocation6 + $0x18] sm:$0xff]
    %v112 = vld [vmem:[#allocation6 + $0x20] sm:$0xff]
    %v113 = vld [vmem:[#allocation6 + $0x28] sm:$0xff]
    %v114 = vld [vmem:[#allocation6 + $0x30] sm:$0xff]
    %v115 = vld [vmem:[#allocation6 + $0x38] sm:$0xff]
    %v116 = vld [vmem:[%s2] sm:$0x3]
    %v118 = vlaneseq
    %v119 = vshrl.u32 %v118, 7
    %v120 = vsub.s32 0, %v119
    %v121 = vrot.slane %v116, %v120
    %v122 = vlaneseq
    %v123 = vshrl.u32 %v122, 7
    %v124 = vsub.s32 1, %v123
    %v125 = vrot.slane %v116, %v124
    %vm128 = vcmask 261120
    %v130 = vsel %vm128, %v106, 0
    %v133 = vsel %vm128, %v107, 0
    %135 = vmatprep.subr.mxu0 %v109
    %136 = vmatpush1.msra.mxu0 %v108
    %137 = vmatprep.subr.mxu0 %v111
    %138 = vmatpush1.msra.mxu0 %v110
    %139 = vmatprep.subr.mxu0 %v113
    %140 = vmatpush1.msra.mxu0 %v112
    %141 = vmatprep.subr.mxu0 %v115
    %142 = vmatpush1.msra.mxu0 %v114
    %143 = vmatprep.subr.mxu0 0.0
    %144 = vmatpush1.msra.mxu0 0.0
    %145 = vmatprep.subr.mxu0 0.0
    %146 = vmatpush1.msra.mxu0 0.0
    %147 = vmatprep.subr.mxu0 0.0
    %148 = vmatpush1.msra.mxu0 0.0
    %149 = vmatprep.subr.mxu0 0.0
    %150 = vmatpush1.msra.mxu0 0.0
    %151 = vmatprep.subr.mxu0 0.0
    %152 = vmatpush1.msra.mxu0 0.0
    %153 = vmatprep.subr.mxu0 0.0
    %154 = vmatpush1.msra.mxu0 0.0
    %155 = vmatprep.subr.mxu0 0.0
    %156 = vmatpush1.msra.mxu0 0.0
    %157 = vmatprep.subr.mxu0 0.0
    %158 = vmatpush1.msra.mxu0 0.0
    %159 = vmatprep.subr.mxu0 0.0
    %160 = vmatpush1.msra.mxu0 0.0
    %161 = vmatprep.subr.mxu0 0.0
    %162 = vmatpush1.msra.mxu0 0.0
    %163 = vmatprep.subr.mxu0 0.0
    %164 = vmatpush1.msra.mxu0 0.0
    %165 = vmatprep.subr.mxu0 0.0
    %166 = vmatpush1.msra.mxu0 0.0
    %167 = vmatprep.subr.mxu0 0.0
    %168 = vmatpush1.msra.mxu0 0.0
    %169 = vmatprep.subr.mxu0 0.0
    %170 = vmatpush1.msra.mxu0 0.0
    %171 = vmatprep.subr.mxu0 0.0
    %172 = vmatpush1.msra.mxu0 0.0
    %173 = vmatprep.subr.mxu0 0.0
    %174 = vmatpush1.msra.mxu0 0.0
    %175 = vmatprep.subr.mxu0 0.0
    %176 = vmatpush1.msra.mxu0 0.0
    %177 = vmatprep.subr.mxu0 0.0
    %178 = vmatpush1.msra.mxu0 0.0
    %179 = vmatprep.subr.mxu0 0.0
    %180 = vmatpush1.msra.mxu0 0.0
    %181 = vmatprep.subr.mxu0 0.0
    %182 = vmatpush1.msra.mxu0 0.0
    %183 = vmatprep.subr.mxu0 0.0
    %184 = vmatpush1.msra.mxu0 0.0
    %185 = vmatprep.subr.mxu0 0.0
    %186 = vmatpush1.msra.mxu0 0.0
    %187 = vmatprep.subr.mxu0 0.0
    %188 = vmatpush1.msra.mxu0 0.0
    %189 = vmatprep.subr.mxu0 0.0
    %190 = vmatpush1.msra.mxu0 0.0
    %191 = vmatprep.subr.mxu0 0.0
    %192 = vmatpush1.msra.mxu0 0.0
    %193 = vmatprep.subr.mxu0 0.0
    %194 = vmatpush1.msra.mxu0 0.0
    %195 = vmatprep.subr.mxu0 0.0
    %196 = vmatpush1.msra.mxu0 0.0
    %197 = vmatprep.subr.mxu0 0.0
    %198 = vmatpush1.msra.mxu0 0.0
    %199 = vmatprep.mubr.f32.mxu0 0.0
    %200 = vmatmul.mubr.f32.gmra.mrb[0].mxu0 %v130
    %v201 = vpop.f32.mrb[0].mxu0
    %v202 = vadd.f32 %v121, %v201
    %v203 = vpop.f32.mrb[0].mxu0
    %v204 = vadd.f32 %v125, %v203
    %205 = vmatprep.mubr.f32.mxu0 0.0
    %206 = vmatmul.mubr.f32.gmra.mrb[0].mxu0 %v133
    %v207 = vpop.f32.mrb[0].mxu0
    %v208 = vadd.f32 %v121, %v207
    %v209 = vpop.f32.mrb[0].mxu0
    %v210 = vadd.f32 %v125, %v209
    %211 = vdwg.mxu0
    %v212 = vtanh.pop %v202
    %v213 = vtanh.pop %v204
    %v215 = vlaneseq
    %v216 = vshrl.u32 %v215, 7
    %v217 = vsub.s32 0, %v216
    %v218 = vrot.slane %v104, %v217
    %v219 = vlaneseq
    %v220 = vshrl.u32 %v219, 7
    %v221 = vsub.s32 1, %v220
    %v222 = vrot.slane %v104, %v221
    %v225 = vmul.f32 %v212, %v218
    %v226 = vmul.f32 %v213, %v222
    %v228 = vlaneseq
    %v229 = vshrl.u32 %v228, 7
    %v230 = vsub.s32 0, %v229
    %v231 = vrot.slane %v105, %v230
    %v232 = vlaneseq
    %v233 = vshrl.u32 %v232, 7
    %v234 = vsub.s32 1, %v233
    %v235 = vrot.slane %v105, %v234
    %v238 = vadd.f32 %v225, %v231
    %v239 = vadd.f32 %v226, %v235
    %v240 = vmul.f32 %v238, 0.0
    %v241 = vmul.f32 %v238, %v239
    %243 = vrot.lane.b32.xlu0 %v241, 64
    %v244 = vpop.permute.xlu0 %243
    %v246 = vadd.f32 %v240, %v244
    %v247 = vtanh.pop %v246
    %v248 = vmul.f32 %v239, %v247
    %v249 = vld [vmem:[%s6] sm:$0x1]
    %v251 = vlaneseq
    %v252 = vshrl.u32 %v251, 7
    %v253 = vsub.s32 0, %v252
    %v254 = vrot.slane %v249, %v253
    %255 = vrot.lane.b32.xlu0 %v254, 64
    %v256 = vpop.permute.xlu0 %255
    %v258 = vmul.f32 %v248, %v256
    %v259 = vmul.f32 %v246, %v256
    %261 = vrot.lane.b32.xlu0 %v258, 64
    %v262 = vpop.permute.xlu0 %261
    %v265 = vrot.slane %v202, 2
    %v266 = vrot.slane %v204, 2
    %vm269 = vcmask 523264
    %v270 = vsel %vm269, %v262, 0
    %272 = vmatprep.subr.mxu0 %v89
    %273 = vmatpush1.msra.mxu0 %v88
    %274 = vmatprep.subr.mxu0 %v91
    %275 = vmatpush1.msra.mxu0 %v90
    %276 = vmatprep.subr.mxu0 %v93
    %277 = vmatpush1.msra.mxu0 %v92
    %278 = vmatprep.subr.mxu0 %v95
    %279 = vmatpush1.msra.mxu0 %v94
    %280 = vmatprep.subr.mxu0 %v97
    %281 = vmatpush1.msra.mxu0 %v96
    %282 = vmatprep.subr.mxu0 %v99
    %283 = vmatpush1.msra.mxu0 %v98
    %284 = vmatprep.subr.mxu0 %v101
    %285 = vmatpush1.msra.mxu0 %v100
    %286 = vmatprep.subr.mxu0 %v103
    %287 = vmatpush1.msra.mxu0 %v102
    %288 = vmatprep.subr.mxu0 0.0
    %289 = vmatpush1.msra.mxu0 0.0
    %290 = vmatprep.subr.mxu0 0.0
    %291 = vmatpush1.msra.mxu0 0.0
    %292 = vmatprep.subr.mxu0 0.0
    %293 = vmatpush1.msra.mxu0 0.0
    %294 = vmatprep.subr.mxu0 0.0
    %295 = vmatpush1.msra.mxu0 0.0
    %296 = vmatprep.subr.mxu0 0.0
    %297 = vmatpush1.msra.mxu0 0.0
    %298 = vmatprep.subr.mxu0 0.0
    %299 = vmatpush1.msra.mxu0 0.0
    %300 = vmatprep.subr.mxu0 0.0
    %301 = vmatpush1.msra.mxu0 0.0
    %302 = vmatprep.subr.mxu0 0.0
    %303 = vmatpush1.msra.mxu0 0.0
    %304 = vmatprep.subr.mxu0 0.0
    %305 = vmatpush1.msra.mxu0 0.0
    %306 = vmatprep.subr.mxu0 0.0
    %307 = vmatpush1.msra.mxu0 0.0
    %308 = vmatprep.subr.mxu0 0.0
    %309 = vmatpush1.msra.mxu0 0.0
    %310 = vmatprep.subr.mxu0 0.0
    %311 = vmatpush1.msra.mxu0 0.0
    %312 = vmatprep.subr.mxu0 0.0
    %313 = vmatpush1.msra.mxu0 0.0
    %314 = vmatprep.subr.mxu0 0.0
    %315 = vmatpush1.msra.mxu0 0.0
    %316 = vmatprep.subr.mxu0 0.0
    %317 = vmatpush1.msra.mxu0 0.0
    %318 = vmatprep.subr.mxu0 0.0
    %319 = vmatpush1.msra.mxu0 0.0
    %320 = vmatprep.subr.mxu0 0.0
    %321 = vmatpush1.msra.mxu0 0.0
    %322 = vmatprep.subr.mxu0 0.0
    %323 = vmatpush1.msra.mxu0 0.0
    %324 = vmatprep.subr.mxu0 0.0
    %325 = vmatpush1.msra.mxu0 0.0
    %326 = vmatprep.subr.mxu0 0.0
    %327 = vmatpush1.msra.mxu0 0.0
    %328 = vmatprep.subr.mxu0 0.0
    %329 = vmatpush1.msra.mxu0 0.0
    %330 = vmatprep.subr.mxu0 0.0
    %331 = vmatpush1.msra.mxu0 0.0
    %332 = vmatprep.subr.mxu0 0.0
    %333 = vmatpush1.msra.mxu0 0.0
    %334 = vmatprep.subr.mxu0 0.0
    %335 = vmatpush1.msra.mxu0 0.0
    %336 = vmatprep.mubr.f32.mxu0 0.0
    %337 = vmatmul.mubr.f32.gmra.mrb[0].mxu0 %v270
    %v338 = vpop.f32.mrb[0].mxu0
    %v339 = vadd.f32 %v265, %v338
    %v340 = vpop.f32.mrb[0].mxu0
    %v341 = vadd.f32 %v266, %v340
    %342 = vdwg.mxu0
    %v343 = vtanh.pop %v339
    %v344 = vtanh.pop %v341
    %v345 = vmul.f32 %v343, %v218
    %v346 = vmul.f32 %v344, %v222
    %v347 = vadd.f32 %v345, %v231
    %v348 = vadd.f32 %v346, %v235
    %v349 = vmul.f32 %v347, %v259
    %v350 = vmul.f32 %v347, %v348
    %352 = vrot.lane.b32.xlu0 %v350, 64
    %v353 = vpop.permute.xlu0 %352
    %v355 = vadd.f32 %v349, %v353
    %v356 = vtanh.pop %v355
    %v357 = vmul.f32 %v348, %v356
    %359 = vrot.lane.b32.xlu0 %v357, 64
    %v360 = vpop.permute.xlu0 %359
    %vm362 = vcmask 517120
    %363 = vst.msk [vmem:[#allocation2] sm:$0x3] %vm362, %v360
    %v364 = vrot.slane %v202, 4
    %v365 = vrot.slane %v204, 4
    %v368 = vsel %vm269, %v360, 0
    %370 = vmatprep.subr.mxu0 %v89
    %371 = vmatpush1.msra.mxu0 %v88
    %372 = vmatprep.subr.mxu0 %v91
    %373 = vmatpush1.msra.mxu0 %v90
    %374 = vmatprep.subr.mxu0 %v93
    %375 = vmatpush1.msra.mxu0 %v92
    %376 = vmatprep.subr.mxu0 %v95
    %377 = vmatpush1.msra.mxu0 %v94
    %378 = vmatprep.subr.mxu0 %v97
    %379 = vmatpush1.msra.mxu0 %v96
    %380 = vmatprep.subr.mxu0 %v99
    %381 = vmatpush1.msra.mxu0 %v98
    %382 = vmatprep.subr.mxu0 %v101
    %383 = vmatpush1.msra.mxu0 %v100
    %384 = vmatprep.subr.mxu0 %v103
    %385 = vmatpush1.msra.mxu0 %v102
    %386 = vmatprep.subr.mxu0 0.0
    %387 = vmatpush1.msra.mxu0 0.0
    %388 = vmatprep.subr.mxu0 0.0
    %389 = vmatpush1.msra.mxu0 0.0
    %390 = vmatprep.subr.mxu0 0.0
    %391 = vmatpush1.msra.mxu0 0.0
    %392 = vmatprep.subr.mxu0 0.0
    %393 = vmatpush1.msra.mxu0 0.0
    %394 = vmatprep.subr.mxu0 0.0
    %395 = vmatpush1.msra.mxu0 0.0
    %396 = vmatprep.subr.mxu0 0.0
    %397 = vmatpush1.msra.mxu0 0.0
    %398 = vmatprep.subr.mxu0 0.0
    %399 = vmatpush1.msra.mxu0 0.0
    %400 = vmatprep.subr.mxu0 0.0
    %401 = vmatpush1.msra.mxu0 0.0
    %402 = vmatprep.subr.mxu0 0.0
    %403 = vmatpush1.msra.mxu0 0.0
    %404 = vmatprep.subr.mxu0 0.0
    %405 = vmatpush1.msra.mxu0 0.0
    %406 = vmatprep.subr.mxu0 0.0
    %407 = vmatpush1.msra.mxu0 0.0
    %408 = vmatprep.subr.mxu0 0.0
    %409 = vmatpush1.msra.mxu0 0.0
    %410 = vmatprep.subr.mxu0 0.0
    %411 = vmatpush1.msra.mxu0 0.0
    %412 = vmatprep.subr.mxu0 0.0
    %413 = vmatpush1.msra.mxu0 0.0
    %414 = vmatprep.subr.mxu0 0.0
    %415 = vmatpush1.msra.mxu0 0.0
    %416 = vmatprep.subr.mxu0 0.0
    %417 = vmatpush1.msra.mxu0 0.0
    %418 = vmatprep.subr.mxu0 0.0
    %419 = vmatpush1.msra.mxu0 0.0
    %420 = vmatprep.subr.mxu0 0.0
    %421 = vmatpush1.msra.mxu0 0.0
    %422 = vmatprep.subr.mxu0 0.0
    %423 = vmatpush1.msra.mxu0 0.0
    %424 = vmatprep.subr.mxu0 0.0
    %425 = vmatpush1.msra.mxu0 0.0
    %426 = vmatprep.subr.mxu0 0.0
    %427 = vmatpush1.msra.mxu0 0.0
    %428 = vmatprep.subr.mxu0 0.0
    %429 = vmatpush1.msra.mxu0 0.0
    %430 = vmatprep.subr.mxu0 0.0
    %431 = vmatpush1.msra.mxu0 0.0
    %432 = vmatprep.subr.mxu0 0.0
    %433 = vmatpush1.msra.mxu0 0.0
    %434 = vmatprep.mubr.f32.mxu0 0.0
    %435 = vmatmul.mubr.f32.gmra.mrb[0].mxu0 %v368
    %v436 = vpop.f32.mrb[0].mxu0
    %v437 = vadd.f32 %v364, %v436
    %v438 = vpop.f32.mrb[0].mxu0
    %v439 = vadd.f32 %v365, %v438
    %440 = vdwg.mxu0
    %v441 = vtanh.pop %v437
    %v442 = vtanh.pop %v439
    %v443 = vmul.f32 %v441, %v218
    %v444 = vmul.f32 %v442, %v222
    %v445 = vadd.f32 %v443, %v231
    %v446 = vadd.f32 %v444, %v235
    %v447 = vmul.f32 %v445, %v355
    %v448 = vmul.f32 %v445, %v446
    %450 = vrot.lane.b32.xlu0 %v448, 64
    %v451 = vpop.permute.xlu0 %450
    %v453 = vadd.f32 %v447, %v451
    %v454 = vtanh.pop %v453
    %v455 = vmul.f32 %v446, %v454
    %457 = vrot.lane.b32.xlu0 %v455, 64
    %v458 = vpop.permute.xlu0 %457
    %460 = vst.msk [vmem:[#allocation2 + $0x2] sm:$0x3] %vm362, %v458
    %v461 = vrot.slane %v202, 6
    %v462 = vrot.slane %v204, 6
    %v465 = vsel %vm269, %v458, 0
    %467 = vmatprep.subr.mxu0 %v89
    %468 = vmatpush1.msra.mxu0 %v88
    %469 = vmatprep.subr.mxu0 %v91
    %470 = vmatpush1.msra.mxu0 %v90
    %471 = vmatprep.subr.mxu0 %v93
    %472 = vmatpush1.msra.mxu0 %v92
    %473 = vmatprep.subr.mxu0 %v95
    %474 = vmatpush1.msra.mxu0 %v94
    %475 = vmatprep.subr.mxu0 %v97
    %476 = vmatpush1.msra.mxu0 %v96
    %477 = vmatprep.subr.mxu0 %v99
    %478 = vmatpush1.msra.mxu0 %v98
    %479 = vmatprep.subr.mxu0 %v101
    %480 = vmatpush1.msra.mxu0 %v100
    %481 = vmatprep.subr.mxu0 %v103
    %482 = vmatpush1.msra.mxu0 %v102
    %483 = vmatprep.subr.mxu0 0.0
    %484 = vmatpush1.msra.mxu0 0.0
    %485 = vmatprep.subr.mxu0 0.0
    %486 = vmatpush1.msra.mxu0 0.0
    %487 = vmatprep.subr.mxu0 0.0
    %488 = vmatpush1.msra.mxu0 0.0
    %489 = vmatprep.subr.mxu0 0.0
    %490 = vmatpush1.msra.mxu0 0.0
    %491 = vmatprep.subr.mxu0 0.0
    %492 = vmatpush1.msra.mxu0 0.0
    %493 = vmatprep.subr.mxu0 0.0
    %494 = vmatpush1.msra.mxu0 0.0
    %495 = vmatprep.subr.mxu0 0.0
    %496 = vmatpush1.msra.mxu0 0.0
    %497 = vmatprep.subr.mxu0 0.0
    %498 = vmatpush1.msra.mxu0 0.0
    %499 = vmatprep.subr.mxu0 0.0
    %500 = vmatpush1.msra.mxu0 0.0
    %501 = vmatprep.subr.mxu0 0.0
    %502 = vmatpush1.msra.mxu0 0.0
    %503 = vmatprep.subr.mxu0 0.0
    %504 = vmatpush1.msra.mxu0 0.0
    %505 = vmatprep.subr.mxu0 0.0
    %506 = vmatpush1.msra.mxu0 0.0
    %507 = vmatprep.subr.mxu0 0.0
    %508 = vmatpush1.msra.mxu0 0.0
    %509 = vmatprep.subr.mxu0 0.0
    %510 = vmatpush1.msra.mxu0 0.0
    %511 = vmatprep.subr.mxu0 0.0
    %512 = vmatpush1.msra.mxu0 0.0
    %513 = vmatprep.subr.mxu0 0.0
    %514 = vmatpush1.msra.mxu0 0.0
    %515 = vmatprep.subr.mxu0 0.0
    %516 = vmatpush1.msra.mxu0 0.0
    %517 = vmatprep.subr.mxu0 0.0
    %518 = vmatpush1.msra.mxu0 0.0
    %519 = vmatprep.subr.mxu0 0.0
    %520 = vmatpush1.msra.mxu0 0.0
    %521 = vmatprep.subr.mxu0 0.0
    %522 = vmatpush1.msra.mxu0 0.0
    %523 = vmatprep.subr.mxu0 0.0
    %524 = vmatpush1.msra.mxu0 0.0
    %525 = vmatprep.subr.mxu0 0.0
    %526 = vmatpush1.msra.mxu0 0.0
    %527 = vmatprep.subr.mxu0 0.0
    %528 = vmatpush1.msra.mxu0 0.0
    %529 = vmatprep.subr.mxu0 0.0
    %530 = vmatpush1.msra.mxu0 0.0
    %531 = vmatprep.mubr.f32.mxu0 0.0
    %532 = vmatmul.mubr.f32.gmra.mrb[0].mxu0 %v465
    %v533 = vpop.f32.mrb[0].mxu0
    %v534 = vadd.f32 %v461, %v533
    %v535 = vpop.f32.mrb[0].mxu0
    %v536 = vadd.f32 %v462, %v535
    %537 = vdwg.mxu0
    %v538 = vtanh.pop %v534
    %v539 = vtanh.pop %v536
    %v540 = vmul.f32 %v538, %v218
    %v541 = vmul.f32 %v539, %v222
    %v542 = vadd.f32 %v540, %v231
    %v543 = vadd.f32 %v541, %v235
    %v544 = vmul.f32 %v542, %v453
    %v545 = vmul.f32 %v542, %v543
    %547 = vrot.lane.b32.xlu0 %v545, 64
    %v548 = vpop.permute.xlu0 %547
    %v550 = vadd.f32 %v544, %v548
    %v551 = vtanh.pop %v550
    %v552 = vmul.f32 %v543, %v551
    %554 = vrot.lane.b32.xlu0 %v552, 64
    %v555 = vpop.permute.xlu0 %554
    %557 = vst.msk [vmem:[#allocation2 + $0x4] sm:$0x3] %vm362, %v555
    %v558 = vsel %vm269, %v555, 0
    %560 = vmatprep.subr.mxu0 %v89
    %561 = vmatpush1.msra.mxu0 %v88
    %562 = vmatprep.subr.mxu0 %v91
    %563 = vmatpush1.msra.mxu0 %v90
    %564 = vmatprep.subr.mxu0 %v93
    %565 = vmatpush1.msra.mxu0 %v92
    %566 = vmatprep.subr.mxu0 %v95
    %567 = vmatpush1.msra.mxu0 %v94
    %568 = vmatprep.subr.mxu0 %v97
    %569 = vmatpush1.msra.mxu0 %v96
    %570 = vmatprep.subr.mxu0 %v99
    %571 = vmatpush1.msra.mxu0 %v98
    %572 = vmatprep.subr.mxu0 %v101
    %573 = vmatpush1.msra.mxu0 %v100
    %574 = vmatprep.subr.mxu0 %v103
    %575 = vmatpush1.msra.mxu0 %v102
    %576 = vmatprep.subr.mxu0 0.0
    %577 = vmatpush1.msra.mxu0 0.0
    %578 = vmatprep.subr.mxu0 0.0
    %579 = vmatpush1.msra.mxu0 0.0
    %580 = vmatprep.subr.mxu0 0.0
    %581 = vmatpush1.msra.mxu0 0.0
    %582 = vmatprep.subr.mxu0 0.0
    %583 = vmatpush1.msra.mxu0 0.0
    %584 = vmatprep.subr.mxu0 0.0
    %585 = vmatpush1.msra.mxu0 0.0
    %586 = vmatprep.subr.mxu0 0.0
    %587 = vmatpush1.msra.mxu0 0.0
    %588 = vmatprep.subr.mxu0 0.0
    %589 = vmatpush1.msra.mxu0 0.0
    %590 = vmatprep.subr.mxu0 0.0
    %591 = vmatpush1.msra.mxu0 0.0
    %592 = vmatprep.subr.mxu0 0.0
    %593 = vmatpush1.msra.mxu0 0.0
    %594 = vmatprep.subr.mxu0 0.0
    %595 = vmatpush1.msra.mxu0 0.0
    %596 = vmatprep.subr.mxu0 0.0
    %597 = vmatpush1.msra.mxu0 0.0
    %598 = vmatprep.subr.mxu0 0.0
    %599 = vmatpush1.msra.mxu0 0.0
    %600 = vmatprep.subr.mxu0 0.0
    %601 = vmatpush1.msra.mxu0 0.0
    %602 = vmatprep.subr.mxu0 0.0
    %603 = vmatpush1.msra.mxu0 0.0
    %604 = vmatprep.subr.mxu0 0.0
    %605 = vmatpush1.msra.mxu0 0.0
    %606 = vmatprep.subr.mxu0 0.0
    %607 = vmatpush1.msra.mxu0 0.0
    %608 = vmatprep.subr.mxu0 0.0
    %609 = vmatpush1.msra.mxu0 0.0
    %610 = vmatprep.subr.mxu0 0.0
    %611 = vmatpush1.msra.mxu0 0.0
    %612 = vmatprep.subr.mxu0 0.0
    %613 = vmatpush1.msra.mxu0 0.0
    %614 = vmatprep.subr.mxu0 0.0
    %615 = vmatpush1.msra.mxu0 0.0
    %616 = vmatprep.subr.mxu0 0.0
    %617 = vmatpush1.msra.mxu0 0.0
    %618 = vmatprep.subr.mxu0 0.0
    %619 = vmatpush1.msra.mxu0 0.0
    %620 = vmatprep.subr.mxu0 0.0
    %621 = vmatpush1.msra.mxu0 0.0
    %622 = vmatprep.subr.mxu0 0.0
    %623 = vmatpush1.msra.mxu0 0.0
    %624 = vmatprep.mubr.f32.mxu0 0.0
    %625 = vmatmul.mubr.f32.gmra.mrb[0].mxu0 %v558
    %v626 = vpop.f32.mrb[0].mxu0
    %v627 = vadd.f32 %v208, %v626
    %v628 = vpop.f32.mrb[0].mxu0
    %v629 = vadd.f32 %v210, %v628
    %630 = vdwg.mxu0
    %v631 = vtanh.pop %v627
    %v632 = vtanh.pop %v629
    %v633 = vmul.f32 %v631, %v218
    %v634 = vmul.f32 %v632, %v222
    %v635 = vadd.f32 %v633, %v231
    %v636 = vadd.f32 %v634, %v235
    %v637 = vmul.f32 %v635, %v550
    %v638 = vmul.f32 %v635, %v636
    %640 = vrot.lane.b32.xlu0 %v638, 64
    %v641 = vpop.permute.xlu0 %640
    %v643 = vadd.f32 %v637, %v641
    %v644 = vtanh.pop %v643
    %v645 = vmul.f32 %v636, %v644
    %647 = vrot.lane.b32.xlu0 %v645, 64
    %v648 = vpop.permute.xlu0 %647
    %650 = vst.msk [vmem:[#allocation2 + $0x6] sm:$0x3] %vm362, %v648
    %v653 = vrot.slane %v208, 2
    %v654 = vrot.slane %v210, 2
    %v657 = vsel %vm269, %v648, 0
    %659 = vmatprep.subr.mxu0 %v89
    %660 = vmatpush1.msra.mxu0 %v88
    %661 = vmatprep.subr.mxu0 %v91
    %662 = vmatpush1.msra.mxu0 %v90
    %663 = vmatprep.subr.mxu0 %v93
    %664 = vmatpush1.msra.mxu0 %v92
    %665 = vmatprep.subr.mxu0 %v95
    %666 = vmatpush1.msra.mxu0 %v94
    %667 = vmatprep.subr.mxu0 %v97
    %668 = vmatpush1.msra.mxu0 %v96
    %669 = vmatprep.subr.mxu0 %v99
    %670 = vmatpush1.msra.mxu0 %v98
    %671 = vmatprep.subr.mxu0 %v101
    %672 = vmatpush1.msra.mxu0 %v100
    %673 = vmatprep.subr.mxu0 %v103
    %674 = vmatpush1.msra.mxu0 %v102
    %675 = vmatprep.subr.mxu0 0.0
    %676 = vmatpush1.msra.mxu0 0.0
    %677 = vmatprep.subr.mxu0 0.0
    %678 = vmatpush1.msra.mxu0 0.0
    %679 = vmatprep.subr.mxu0 0.0
    %680 = vmatpush1.msra.mxu0 0.0
    %681 = vmatprep.subr.mxu0 0.0
    %682 = vmatpush1.msra.mxu0 0.0
    %683 = vmatprep.subr.mxu0 0.0
    %684 = vmatpush1.msra.mxu0 0.0
    %685 = vmatprep.subr.mxu0 0.0
    %686 = vmatpush1.msra.mxu0 0.0
    %687 = vmatprep.subr.mxu0 0.0
    %688 = vmatpush1.msra.mxu0 0.0
    %689 = vmatprep.subr.mxu0 0.0
    %690 = vmatpush1.msra.mxu0 0.0
    %691 = vmatprep.subr.mxu0 0.0
    %692 = vmatpush1.msra.mxu0 0.0
    %693 = vmatprep.subr.mxu0 0.0
    %694 = vmatpush1.msra.mxu0 0.0
    %695 = vmatprep.subr.mxu0 0.0
    %696 = vmatpush1.msra.mxu0 0.0
    %697 = vmatprep.subr.mxu0 0.0
    %698 = vmatpush1.msra.mxu0 0.0
    %699 = vmatprep.subr.mxu0 0.0
    %700 = vmatpush1.msra.mxu0 0.0
    %701 = vmatprep.subr.mxu0 0.0
    %702 = vmatpush1.msra.mxu0 0.0
    %703 = vmatprep.subr.mxu0 0.0
    %704 = vmatpush1.msra.mxu0 0.0
    %705 = vmatprep.subr.mxu0 0.0
    %706 = vmatpush1.msra.mxu0 0.0
    %707 = vmatprep.subr.mxu0 0.0
    %708 = vmatpush1.msra.mxu0 0.0
    %709 = vmatprep.subr.mxu0 0.0
    %710 = vmatpush1.msra.mxu0 0.0
    %711 = vmatprep.subr.mxu0 0.0
    %712 = vmatpush1.msra.mxu0 0.0
    %713 = vmatprep.subr.mxu0 0.0
    %714 = vmatpush1.msra.mxu0 0.0
    %715 = vmatprep.subr.mxu0 0.0
    %716 = vmatpush1.msra.mxu0 0.0
    %717 = vmatprep.subr.mxu0 0.0
    %718 = vmatpush1.msra.mxu0 0.0
    %719 = vmatprep.subr.mxu0 0.0
    %720 = vmatpush1.msra.mxu0 0.0
    %721 = vmatprep.subr.mxu0 0.0
    %722 = vmatpush1.msra.mxu0 0.0
    %723 = vmatprep.mubr.f32.mxu0 0.0
    %724 = vmatmul.mubr.f32.gmra.mrb[0].mxu0 %v657
    %v725 = vpop.f32.mrb[0].mxu0
    %v726 = vadd.f32 %v653, %v725
    %v727 = vpop.f32.mrb[0].mxu0
    %v728 = vadd.f32 %v654, %v727
    %729 = vdwg.mxu0
    %v730 = vtanh.pop %v726
    %v731 = vtanh.pop %v728
    %v732 = vmul.f32 %v730, %v218
    %v733 = vmul.f32 %v731, %v222
    %v734 = vadd.f32 %v732, %v231
    %v735 = vadd.f32 %v733, %v235
    %v736 = vmul.f32 %v734, %v643
    %v737 = vmul.f32 %v734, %v735
    %739 = vrot.lane.b32.xlu0 %v737, 64
    %v740 = vpop.permute.xlu0 %739
    %v742 = vadd.f32 %v736, %v740
    %v743 = vtanh.pop %v742
    %v744 = vmul.f32 %v735, %v743
    %746 = vrot.lane.b32.xlu0 %v744, 64
    %v747 = vpop.permute.xlu0 %746
    %749 = vst.msk [vmem:[#allocation2 + $0x8] sm:$0x3] %vm362, %v747
    %v750 = vrot.slane %v208, 4
    %v751 = vrot.slane %v210, 4
    %v754 = vsel %vm269, %v747, 0
    %756 = vmatprep.subr.mxu0 %v89
    %757 = vmatpush1.msra.mxu0 %v88
    %758 = vmatprep.subr.mxu0 %v91
    %759 = vmatpush1.msra.mxu0 %v90
    %760 = vmatprep.subr.mxu0 %v93
    %761 = vmatpush1.msra.mxu0 %v92
    %762 = vmatprep.subr.mxu0 %v95
    %763 = vmatpush1.msra.mxu0 %v94
    %764 = vmatprep.subr.mxu0 %v97
    %765 = vmatpush1.msra.mxu0 %v96
    %766 = vmatprep.subr.mxu0 %v99
    %767 = vmatpush1.msra.mxu0 %v98
    %768 = vmatprep.subr.mxu0 %v101
    %769 = vmatpush1.msra.mxu0 %v100
    %770 = vmatprep.subr.mxu0 %v103
    %771 = vmatpush1.msra.mxu0 %v102
    %772 = vmatprep.subr.mxu0 0.0
    %773 = vmatpush1.msra.mxu0 0.0
    %774 = vmatprep.subr.mxu0 0.0
    %775 = vmatpush1.msra.mxu0 0.0
    %776 = vmatprep.subr.mxu0 0.0
    %777 = vmatpush1.msra.mxu0 0.0
    %778 = vmatprep.subr.mxu0 0.0
    %779 = vmatpush1.msra.mxu0 0.0
    %780 = vmatprep.subr.mxu0 0.0
    %781 = vmatpush1.msra.mxu0 0.0
    %782 = vmatprep.subr.mxu0 0.0
    %783 = vmatpush1.msra.mxu0 0.0
    %784 = vmatprep.subr.mxu0 0.0
    %785 = vmatpush1.msra.mxu0 0.0
    %786 = vmatprep.subr.mxu0 0.0
    %787 = vmatpush1.msra.mxu0 0.0
    %788 = vmatprep.subr.mxu0 0.0
    %789 = vmatpush1.msra.mxu0 0.0
    %790 = vmatprep.subr.mxu0 0.0
    %791 = vmatpush1.msra.mxu0 0.0
    %792 = vmatprep.subr.mxu0 0.0
    %793 = vmatpush1.msra.mxu0 0.0
    %794 = vmatprep.subr.mxu0 0.0
    %795 = vmatpush1.msra.mxu0 0.0
    %796 = vmatprep.subr.mxu0 0.0
    %797 = vmatpush1.msra.mxu0 0.0
    %798 = vmatprep.subr.mxu0 0.0
    %799 = vmatpush1.msra.mxu0 0.0
    %800 = vmatprep.subr.mxu0 0.0
    %801 = vmatpush1.msra.mxu0 0.0
    %802 = vmatprep.subr.mxu0 0.0
    %803 = vmatpush1.msra.mxu0 0.0
    %804 = vmatprep.subr.mxu0 0.0
    %805 = vmatpush1.msra.mxu0 0.0
    %806 = vmatprep.subr.mxu0 0.0
    %807 = vmatpush1.msra.mxu0 0.0
    %808 = vmatprep.subr.mxu0 0.0
    %809 = vmatpush1.msra.mxu0 0.0
    %810 = vmatprep.subr.mxu0 0.0
    %811 = vmatpush1.msra.mxu0 0.0
    %812 = vmatprep.subr.mxu0 0.0
    %813 = vmatpush1.msra.mxu0 0.0
    %814 = vmatprep.subr.mxu0 0.0
    %815 = vmatpush1.msra.mxu0 0.0
    %816 = vmatprep.subr.mxu0 0.0
    %817 = vmatpush1.msra.mxu0 0.0
    %818 = vmatprep.subr.mxu0 0.0
    %819 = vmatpush1.msra.mxu0 0.0
    %820 = vmatprep.mubr.f32.mxu0 0.0
    %821 = vmatmul.mubr.f32.gmra.mrb[0].mxu0 %v754
    %v822 = vpop.f32.mrb[0].mxu0
    %v823 = vadd.f32 %v750, %v822
    %v824 = vpop.f32.mrb[0].mxu0
    %v825 = vadd.f32 %v751, %v824
    %826 = vdwg.mxu0
    %v827 = vtanh.pop %v823
    %v828 = vtanh.pop %v825
    %v829 = vmul.f32 %v827, %v218
    %v830 = vmul.f32 %v828, %v222
    %v831 = vadd.f32 %v829, %v231
    %v832 = vadd.f32 %v830, %v235
    %v833 = vmul.f32 %v831, %v742
    %v834 = vmul.f32 %v831, %v832
    %836 = vrot.lane.b32.xlu0 %v834, 64
    %v837 = vpop.permute.xlu0 %836
    %v839 = vadd.f32 %v833, %v837
    %v840 = vtanh.pop %v839
    %v841 = vmul.f32 %v832, %v840
    %843 = vrot.lane.b32.xlu0 %v841, 64
    %v844 = vpop.permute.xlu0 %843
    %846 = vst.msk [vmem:[#allocation2 + $0xa] sm:$0x3] %vm362, %v844
    %v847 = vrot.slane %v208, 6
    %v848 = vrot.slane %v210, 6
    %v851 = vsel %vm269, %v844, 0
    %853 = vmatprep.subr.mxu0 %v89
    %854 = vmatpush1.msra.mxu0 %v88
    %855 = vmatprep.subr.mxu0 %v91
    %856 = vmatpush1.msra.mxu0 %v90
    %857 = vmatprep.subr.mxu0 %v93
    %858 = vmatpush1.msra.mxu0 %v92
    %859 = vmatprep.subr.mxu0 %v95
    %860 = vmatpush1.msra.mxu0 %v94
    %861 = vmatprep.subr.mxu0 %v97
    %862 = vmatpush1.msra.mxu0 %v96
    %863 = vmatprep.subr.mxu0 %v99
    %864 = vmatpush1.msra.mxu0 %v98
    %865 = vmatprep.subr.mxu0 %v101
    %866 = vmatpush1.msra.mxu0 %v100
    %867 = vmatprep.subr.mxu0 %v103
    %868 = vmatpush1.msra.mxu0 %v102
    %869 = vmatprep.subr.mxu0 0.0
    %870 = vmatpush1.msra.mxu0 0.0
    %871 = vmatprep.subr.mxu0 0.0
    %872 = vmatpush1.msra.mxu0 0.0
    %873 = vmatprep.subr.mxu0 0.0
    %874 = vmatpush1.msra.mxu0 0.0
    %875 = vmatprep.subr.mxu0 0.0
    %876 = vmatpush1.msra.mxu0 0.0
    %877 = vmatprep.subr.mxu0 0.0
    %878 = vmatpush1.msra.mxu0 0.0
    %879 = vmatprep.subr.mxu0 0.0
    %880 = vmatpush1.msra.mxu0 0.0
    %881 = vmatprep.subr.mxu0 0.0
    %882 = vmatpush1.msra.mxu0 0.0
    %883 = vmatprep.subr.mxu0 0.0
    %884 = vmatpush1.msra.mxu0 0.0
    %885 = vmatprep.subr.mxu0 0.0
    %886 = vmatpush1.msra.mxu0 0.0
    %887 = vmatprep.subr.mxu0 0.0
    %888 = vmatpush1.msra.mxu0 0.0
    %889 = vmatprep.subr.mxu0 0.0
    %890 = vmatpush1.msra.mxu0 0.0
    %891 = vmatprep.subr.mxu0 0.0
    %892 = vmatpush1.msra.mxu0 0.0
    %893 = vmatprep.subr.mxu0 0.0
    %894 = vmatpush1.msra.mxu0 0.0
    %895 = vmatprep.subr.mxu0 0.0
    %896 = vmatpush1.msra.mxu0 0.0
    %897 = vmatprep.subr.mxu0 0.0
    %898 = vmatpush1.msra.mxu0 0.0
    %899 = vmatprep.subr.mxu0 0.0
    %900 = vmatpush1.msra.mxu0 0.0
    %901 = vmatprep.subr.mxu0 0.0
    %902 = vmatpush1.msra.mxu0 0.0
    %903 = vmatprep.subr.mxu0 0.0
    %904 = vmatpush1.msra.mxu0 0.0
    %905 = vmatprep.subr.mxu0 0.0
    %906 = vmatpush1.msra.mxu0 0.0
    %907 = vmatprep.subr.mxu0 0.0
    %908 = vmatpush1.msra.mxu0 0.0
    %909 = vmatprep.subr.mxu0 0.0
    %910 = vmatpush1.msra.mxu0 0.0
    %911 = vmatprep.subr.mxu0 0.0
    %912 = vmatpush1.msra.mxu0 0.0
    %913 = vmatprep.subr.mxu0 0.0
    %914 = vmatpush1.msra.mxu0 0.0
    %915 = vmatprep.subr.mxu0 0.0
    %916 = vmatpush1.msra.mxu0 0.0
    %917 = vmatprep.mubr.f32.mxu0 0.0
    %918 = vmatmul.mubr.f32.gmra.mrb[0].mxu0 %v851
    %v919 = vpop.f32.mrb[0].mxu0
    %v920 = vadd.f32 %v847, %v919
    %v921 = vpop.f32.mrb[0].mxu0
    %v922 = vadd.f32 %v848, %v921
    %923 = vdwg.mxu0
    %v924 = vtanh.pop %v920
    %v925 = vtanh.pop %v922
    %v926 = vmul.f32 %v924, %v218
    %v927 = vmul.f32 %v925, %v222
    %v928 = vadd.f32 %v926, %v231
    %v929 = vadd.f32 %v927, %v235
    %v930 = vmul.f32 %v928, %v839
    %v931 = vmul.f32 %v928, %v929
    %933 = vrot.lane.b32.xlu0 %v931, 64
    %v934 = vpop.permute.xlu0 %933
    %v936 = vadd.f32 %v930, %v934
    %v937 = vtanh.pop %v936
    %v938 = vmul.f32 %v929, %v937
    %940 = vrot.lane.b32.xlu0 %v938, 64
    %v941 = vpop.permute.xlu0 %940
    %943 = vst.msk [vmem:[#allocation2 + $0xc] sm:$0x3] %vm362, %v941
    %v944 = vsel %vm269, %v941, 0
    %946 = vmatprep.subr.mxu0 %v89
    %947 = vmatpush1.msra.mxu0 %v88
    %948 = vmatprep.subr.mxu0 %v91
    %949 = vmatpush1.msra.mxu0 %v90
    %950 = vmatprep.subr.mxu0 %v93
    %951 = vmatpush1.msra.mxu0 %v92
    %952 = vmatprep.subr.mxu0 %v95
    %953 = vmatpush1.msra.mxu0 %v94
    %954 = vmatprep.subr.mxu0 %v97
    %955 = vmatpush1.msra.mxu0 %v96
    %956 = vmatprep.subr.mxu0 %v99
    %957 = vmatpush1.msra.mxu0 %v98
    %958 = vmatprep.subr.mxu0 %v101
    %959 = vmatpush1.msra.mxu0 %v100
    %960 = vmatprep.subr.mxu0 %v103
    %961 = vmatpush1.msra.mxu0 %v102
    %962 = vmatprep.subr.mxu0 0.0
    %963 = vmatpush1.msra.mxu0 0.0
    %964 = vmatprep.subr.mxu0 0.0
    %965 = vmatpush1.msra.mxu0 0.0
    %966 = vmatprep.subr.mxu0 0.0
    %967 = vmatpush1.msra.mxu0 0.0
    %968 = vmatprep.subr.mxu0 0.0
    %969 = vmatpush1.msra.mxu0 0.0
    %970 = vmatprep.subr.mxu0 0.0
    %971 = vmatpush1.msra.mxu0 0.0
    %972 = vmatprep.subr.mxu0 0.0
    %973 = vmatpush1.msra.mxu0 0.0
    %974 = vmatprep.subr.mxu0 0.0
    %975 = vmatpush1.msra.mxu0 0.0
    %976 = vmatprep.subr.mxu0 0.0
    %977 = vmatpush1.msra.mxu0 0.0
    %978 = vmatprep.subr.mxu0 0.0
    %979 = vmatpush1.msra.mxu0 0.0
    %980 = vmatprep.subr.mxu0 0.0
    %981 = vmatpush1.msra.mxu0 0.0
    %982 = vmatprep.subr.mxu0 0.0
    %983 = vmatpush1.msra.mxu0 0.0
    %984 = vmatprep.subr.mxu0 0.0
    %985 = vmatpush1.msra.mxu0 0.0
    %986 = vmatprep.subr.mxu0 0.0
    %987 = vmatpush1.msra.mxu0 0.0
    %988 = vmatprep.subr.mxu0 0.0
    %989 = vmatpush1.msra.mxu0 0.0
    %990 = vmatprep.subr.mxu0 0.0
    %991 = vmatpush1.msra.mxu0 0.0
    %992 = vmatprep.subr.mxu0 0.0
    %993 = vmatpush1.msra.mxu0 0.0
    %994 = vmatprep.subr.mxu0 0.0
    %995 = vmatpush1.msra.mxu0 0.0
    %996 = vmatprep.subr.mxu0 0.0
    %997 = vmatpush1.msra.mxu0 0.0
    %998 = vmatprep.subr.mxu0 0.0
    %999 = vmatpush1.msra.mxu0 0.0
    %1000 = vmatprep.subr.mxu0 0.0
    %1001 = vmatpush1.msra.mxu0 0.0
    %1002 = vmatprep.subr.mxu0 0.0
    %1003 = vmatpush1.msra.mxu0 0.0
    %1004 = vmatprep.subr.mxu0 0.0
    %1005 = vmatpush1.msra.mxu0 0.0
    %1006 = vmatprep.subr.mxu0 0.0
    %1007 = vmatpush1.msra.mxu0 0.0
    %1008 = vmatprep.subr.mxu0 0.0
    %1009 = vmatpush1.msra.mxu0 0.0
    %1010 = vmatprep.mubr.f32.mxu0 0.0
    %1011 = vmatmul.mubr.f32.gmra.mrb[0].mxu0 %v944
    %v1012 = vpop.f32.mrb[0].mxu0
    %v1013 = vadd.f32 %v121, %v1012
    %v1014 = vpop.f32.mrb[0].mxu0
    %v1015 = vadd.f32 %v125, %v1014
    %1016 = vdwg.mxu0
    %v1017 = vtanh.pop %v1013
    %v1018 = vtanh.pop %v1015
    %v1019 = vmul.f32 %v1017, %v218
    %v1020 = vmul.f32 %v1018, %v222
    %v1021 = vadd.f32 %v1019, %v231
    %v1022 = vadd.f32 %v1020, %v235
    %v1023 = vmul.f32 %v1021, %v936
    %v1024 = vmul.f32 %v1021, %v1022
    %1026 = vrot.lane.b32.xlu0 %v1024, 64
    %v1027 = vpop.permute.xlu0 %1026
    %v1029 = vadd.f32 %v1023, %v1027
    %v1030 = vtanh.pop %v1029
    %v1031 = vmul.f32 %v1022, %v1030
    %1033 = vrot.lane.b32.xlu0 %v1031, 64
    %v1034 = vpop.permute.xlu0 %1033
    %1036 = vst.msk [vmem:[#allocation2 + $0xe] sm:$0x3] %vm362, %v1034
    %v1037 = vld [vmem:[#allocation2] sm:$0xff]
    %v1038 = vld [vmem:[#allocation2 + $0x8] sm:$0xff]
    %v1039 = vld [vmem:[#allocation9] sm:$0xff]
    %v1040 = vld [vmem:[#allocation9 + $0x8] sm:$0xff]
    %v1041 = vld [vmem:[#allocation9 + $0x10] sm:$0xff]
    %v1042 = vld [vmem:[#allocation9 + $0x18] sm:$0xff]
    %v1043 = vld [vmem:[#allocation9 + $0x20] sm:$0xff]
    %v1044 = vld [vmem:[#allocation9 + $0x28] sm:$0xff]
    %v1045 = vld [vmem:[#allocation9 + $0x30] sm:$0xff]
    %v1046 = vld [vmem:[#allocation9 + $0x38] sm:$0xff]
    %v1047 = vld [vmem:[%s8] sm:$0x1]
    %v1049 = vlaneseq
    %v1050 = vshrl.u32 %v1049, 7
    %v1051 = vsub.s32 0, %v1050
    %v1052 = vrot.slane %v1047, %v1051
    %v1055 = vsel %vm269, %v1037, 0
    %v1058 = vsel %vm269, %v1038, 0
    %1060 = vmatprep.subr.mxu0 0.0
    %1061 = vmatpush1.msra.mxu0 %v1039
    %1062 = vmatprep.subr.mxu0 0.0
    %1063 = vmatpush1.msra.mxu0 %v1040
    %1064 = vmatprep.subr.mxu0 0.0
    %1065 = vmatpush1.msra.mxu0 %v1041
    %1066 = vmatprep.subr.mxu0 0.0
    %1067 = vmatpush1.msra.mxu0 %v1042
    %1068 = vmatprep.subr.mxu0 0.0
    %1069 = vmatpush1.msra.mxu0 %v1043
    %1070 = vmatprep.subr.mxu0 0.0
    %1071 = vmatpush1.msra.mxu0 %v1044
    %1072 = vmatprep.subr.mxu0 0.0
    %1073 = vmatpush1.msra.mxu0 %v1045
    %1074 = vmatprep.subr.mxu0 0.0
    %1075 = vmatpush1.msra.mxu0 %v1046
    %1076 = vmatprep.subr.mxu0 0.0
    %1077 = vmatpush1.msra.mxu0 0.0
    %1078 = vmatprep.subr.mxu0 0.0
    %1079 = vmatpush1.msra.mxu0 0.0
    %1080 = vmatprep.subr.mxu0 0.0
    %1081 = vmatpush1.msra.mxu0 0.0
    %1082 = vmatprep.subr.mxu0 0.0
    %1083 = vmatpush1.msra.mxu0 0.0
    %1084 = vmatprep.subr.mxu0 0.0
    %1085 = vmatpush1.msra.mxu0 0.0
    %1086 = vmatprep.subr.mxu0 0.0
    %1087 = vmatpush1.msra.mxu0 0.0
    %1088 = vmatprep.subr.mxu0 0.0
    %1089 = vmatpush1.msra.mxu0 0.0
    %1090 = vmatprep.subr.mxu0 0.0
    %1091 = vmatpush1.msra.mxu0 0.0
    %1092 = vmatprep.subr.mxu0 0.0
    %1093 = vmatpush1.msra.mxu0 0.0
    %1094 = vmatprep.subr.mxu0 0.0
    %1095 = vmatpush1.msra.mxu0 0.0
    %1096 = vmatprep.subr.mxu0 0.0
    %1097 = vmatpush1.msra.mxu0 0.0
    %1098 = vmatprep.subr.mxu0 0.0
    %1099 = vmatpush1.msra.mxu0 0.0
    %1100 = vmatprep.subr.mxu0 0.0
    %1101 = vmatpush1.msra.mxu0 0.0
    %1102 = vmatprep.subr.mxu0 0.0
    %1103 = vmatpush1.msra.mxu0 0.0
    %1104 = vmatprep.subr.mxu0 0.0
    %1105 = vmatpush1.msra.mxu0 0.0
    %1106 = vmatprep.subr.mxu0 0.0
    %1107 = vmatpush1.msra.mxu0 0.0
    %1108 = vmatprep.subr.mxu0 0.0
    %1109 = vmatpush1.msra.mxu0 0.0
    %1110 = vmatprep.subr.mxu0 0.0
    %1111 = vmatpush1.msra.mxu0 0.0
    %1112 = vmatprep.subr.mxu0 0.0
    %1113 = vmatpush1.msra.mxu0 0.0
    %1114 = vmatprep.subr.mxu0 0.0
    %1115 = vmatpush1.msra.mxu0 0.0
    %1116 = vmatprep.subr.mxu0 0.0
    %1117 = vmatpush1.msra.mxu0 0.0
    %1118 = vmatprep.subr.mxu0 0.0
    %1119 = vmatpush1.msra.mxu0 0.0
    %1120 = vmatprep.subr.mxu0 0.0
    %1121 = vmatpush1.msra.mxu0 0.0
    %1122 = vmatprep.subr.mxu0 0.0
    %1123 = vmatpush1.msra.mxu0 0.0
    %1124 = vmatprep.mubr.f32.mxu0 0.0
    %1125 = vmatmul.mubr.f32.gmra.mrb[0].mxu0 %v1055
    %v1126 = vpop.f32.mrb[0].mxu0
    %v1127 = vadd.f32 %v1052, %v1126
    %v1128 = vpop.f32.mrb[0].mxu0
    %1129 = vmatprep.mubr.f32.mxu0 0.0
    %1130 = vmatmul.mubr.f32.gmra.mrb[0].mxu0 %v1058
    %v1131 = vpop.f32.mrb[0].mxu0
    %v1132 = vadd.f32 %v1052, %v1131
    %v1133 = vpop.f32.mrb[0].mxu0
    %1134 = vdwg.mxu0
    %1135 = vst [vmem:[#allocation11] sm:$0xff] %v1127
    %1136 = vst [vmem:[#allocation11 + $0x8] sm:$0xff] %v1132
    // Predicated region
    $region54: #{tpu_custom_call.1} parent=1 // pred_check
      _
    $region55: #{tpu_custom_call.1} parent=1 // pred_check_branch
      %1138 = sbr.rel (0) target = $region57
    $region56: #{tpu_custom_call.1} parent=1 // pred_region
      %s1140 = ssub.s32 256, 256
      %1141 = vsyncadd [#allocation5], %s1140
      %s1142 = sshll.u32 [#allocation11], 4
      %s1143 = int_to_ptr.vmem [resolvable:$true] %s1142
      %1148 = dma.vmem_to_hbm [thread:$0]  %s1143, 256, %s9, [#allocation5], 128, 128, 8
    $region57: #{tpu_custom_call.1} parent=1 // pred_fallthru
      _
    // Predicated region
    $region58: #{tpu_custom_call.1} parent=1 // pred_check
      _
    $region59: #{tpu_custom_call.1} parent=1 // pred_check_branch
      %1150 = sbr.rel (0) target = $region61
    $region60: #{tpu_custom_call.1} parent=1 // pred_region
      %1151 = dma.done [#allocation5], 256
    $region61: #{tpu_custom_call.1} parent=1 // pred_fallthru
      _
    %1152 = vsyncpa [#allocation4], 1
    %1153 = vsyncpa [#allocation7], 1
    %1154 = vsyncpa [#allocation10], 1
    %1155 = vsyncpa [#allocation5], 1

</llo_original>
